<compile_context>
chip_gen: v7x
topology: tpu7x:2x2x1
jax: 0.10.0
libtpu: 0.0.40
codegen_flags: <defaults>
</compile_context>

<pallas_src>
import functools
import math

import jax
import jax.numpy as jnp
from jax.experimental import pallas as pl
from jax.experimental.pallas import tpu as pltpu

EPS = 1e-6
LN_ALPHA = 1.0           # nn.Parameter(torch.ones(1))
LN_BIAS = 0.0            # nn.Parameter(torch.zeros(1))
NEG_INF = -1e9
MM_DTYPE = jnp.bfloat16  # MXU input dtype (all accumulation stays f32)

_PARALLEL_1D = pltpu.CompilerParams(dimension_semantics=("parallel",))


# ----------------------------------------------------------------------------
# In-kernel helpers (traced inside Pallas kernels only)
# ----------------------------------------------------------------------------
def _layer_norm(x):
    """alpha*(x-mean)/(std+eps)+bias with unbiased std (matches torch.std)."""
    d = x.shape[-1]
    mean = jnp.mean(x, axis=-1, keepdims=True)
    xc = x - mean
    var = jnp.sum(xc * xc, axis=-1, keepdims=True) / (d - 1)
    std = jnp.sqrt(var)
    # exact division kept here for fidelity with the f32 reference; the
    # softmax denominator below uses the approximate EUP reciprocal instead.
    return LN_ALPHA * (xc / (std + EPS)) + LN_BIAS


def _mha_core(q, k, v, mask, wo, *, H, dk, scale):
    """All-heads masked attention + output projection for one batch element.

    q:(Sq,D) k,v:(Sk,D) f32, mask:(Mq,Sk) f32 with Mq in {1,Sq}, wo:(D,D) bf16.
    Returns (Sq, D) f32 (before output bias / residual).
    """
    # TODO(synk): for long sequences replace the full Sq x Sk score matrix with
    # a KV-tiled online-softmax (flash) loop + VMEM running max/denominator.
    Sq, D = q.shape
    Sk = k.shape[0]
    keep = jnp.broadcast_to(mask, (Sq, Sk)) != 0.0
    out = jnp.zeros((Sq, D), jnp.float32)
    for h in range(H):                                    # static unroll, H small
        sl = slice(h * dk, (h + 1) * dk)
        qh = q[:, sl].astype(MM_DTYPE)
        kh = k[:, sl].astype(MM_DTYPE)
        vh = v[:, sl].astype(MM_DTYPE)
        s = jax.lax.dot_general(qh, kh, (((1,), (1,)), ((), ())),
                                preferred_element_type=jnp.float32) * scale
        s = jnp.where(keep, s, NEG_INF)
        s = s - jnp.max(s, axis=-1, keepdims=True)
        p = jnp.exp(s)
        p = p * pl.reciprocal(jnp.sum(p, axis=-1, keepdims=True), approx=True)
        oh = jnp.dot(p.astype(MM_DTYPE), vh, preferred_element_type=jnp.float32)
        # head merge without transpose/concat: accumulate head_h @ Wo[rows_h]
        out = out + jnp.dot(oh.astype(MM_DTYPE), wo[sl, :],
                            preferred_element_type=jnp.float32)
    return out


# ----------------------------------------------------------------------------
# Pallas kernels (one per residual sub-block, plus the final LayerNorm)
# ----------------------------------------------------------------------------
def _self_attn_block_kernel(x_ref, m_ref, wqkv_ref, bqkv_ref, wo_ref, bo_ref,
                            o_ref, *, H, dk, D, scale):
    """Fused: pre-LN -> QKV projection -> masked MHA -> Wo -> +bias +residual."""
    x = x_ref[0]                                          # (S, D) f32
    n = _layer_norm(x)
    qkv = jnp.dot(n.astype(MM_DTYPE), wqkv_ref[...],
                  preferred_element_type=jnp.float32) + bqkv_ref[...]
    attn = _mha_core(qkv[:, :D], qkv[:, D:2 * D], qkv[:, 2 * D:],
                     m_ref[0], wo_ref[...], H=H, dk=dk, scale=scale)
    o_ref[0] = x + attn + bo_ref[...]


def _cross_attn_block_kernel(x_ref, enc_ref, m_ref, wq_ref, bq_ref, wkv_ref,
                             bkv_ref, wo_ref, bo_ref, o_ref, *, H, dk, D, scale):
    """Fused: pre-LN(x) -> Q proj;  enc -> fused KV proj;  MHA -> Wo -> +res."""
    x = x_ref[0]                                          # (Sq, D) f32
    enc = enc_ref[0]                                      # (Sk, D) f32
    n = _layer_norm(x)
    q = jnp.dot(n.astype(MM_DTYPE), wq_ref[...],
                preferred_element_type=jnp.float32) + bq_ref[...]
    kv = jnp.dot(enc.astype(MM_DTYPE), wkv_ref[...],
                 preferred_element_type=jnp.float32) + bkv_ref[...]
    attn = _mha_core(q, kv[:, :D], kv[:, D:], m_ref[0], wo_ref[...],
                     H=H, dk=dk, scale=scale)
    o_ref[0] = x + attn + bo_ref[...]


def _ffn_block_kernel(x_ref, w1_ref, b1_ref, w2_ref, b2_ref, o_ref):
    """Fused: pre-LN -> Linear -> ReLU -> Linear -> +residual."""
    # TODO(synk): at production D/d_ff add a K-tiled reduction grid axis with a
    # f32 VMEM accumulator and stream the FFN weights (v7x has only 64 MiB
    # VMEM); at these shapes the full (bf16) weights fit VMEM comfortably.
    x = x_ref[...]                                        # (tm, D) f32
    n = _layer_norm(x)
    h = jnp.dot(n.astype(MM_DTYPE), w1_ref[...],
                preferred_element_type=jnp.float32) + b1_ref[...]
    h = jnp.maximum(h, 0.0)
    y = jnp.dot(h.astype(MM_DTYPE), w2_ref[...],
                preferred_element_type=jnp.float32) + b2_ref[...]
    o_ref[...] = x + y


def _final_ln_kernel(x_ref, o_ref):
    o_ref[...] = _layer_norm(x_ref[...])


# ----------------------------------------------------------------------------
# pallas_call wrappers
# ----------------------------------------------------------------------------
def _row_tile(m, cap=256):
    """Largest row tile <= cap that is a multiple of 8 and divides m (else m)."""
    for t in (256, 128, 64, 32, 16, 8):
        if t <= cap and m % t == 0:
            return t
    return m


def self_attention_block(x, mask3, p, H):
    B, S, D = x.shape
    dk = D // H
    scale = 1.0 / math.sqrt(dk)
    Mb, Mq, Mk = mask3.shape
    mask_map = (lambda b: (b, 0, 0)) if Mb > 1 else (lambda b: (0, 0, 0))
    kernel = functools.partial(_self_attn_block_kernel, H=H, dk=dk, D=D,
                               scale=scale)
    return pl.pallas_call(
        kernel,
        out_shape=jax.ShapeDtypeStruct((B, S, D), jnp.float32),
        grid=(B,),
        in_specs=[
            pl.BlockSpec((1, S, D), lambda b: (b, 0, 0)),        # x (residual)
            pl.BlockSpec((1, Mq, Mk), mask_map),                 # mask (resident)
            pl.BlockSpec((D, 3 * D), lambda b: (0, 0)),          # Wqkv (bf16)
            pl.BlockSpec((1, 3 * D), lambda b: (0, 0)),          # bqkv
            pl.BlockSpec((D, D), lambda b: (0, 0)),              # Wo (bf16)
            pl.BlockSpec((1, D), lambda b: (0, 0)),              # bo
        ],
        out_specs=pl.BlockSpec((1, S, D), lambda b: (b, 0, 0)),
        compiler_params=_PARALLEL_1D,
    )(x, mask3, p["wqkv"], p["bqkv"], p["wo"], p["bo"])


def cross_attention_block(x, enc, mask3, p, H):
    B, Sq, D = x.shape
    Sk = enc.shape[1]
    dk = D // H
    scale = 1.0 / math.sqrt(dk)
    Mb, Mq, Mk = mask3.shape
    mask_map = (lambda b: (b, 0, 0)) if Mb > 1 else (lambda b: (0, 0, 0))
    kernel = functools.partial(_cross_attn_block_kernel, H=H, dk=dk, D=D,
                               scale=scale)
    return pl.pallas_call(
        kernel,
        out_shape=jax.ShapeDtypeStruct((B, Sq, D), jnp.float32),
        grid=(B,),
        in_specs=[
            pl.BlockSpec((1, Sq, D), lambda b: (b, 0, 0)),       # x (residual)
            pl.BlockSpec((1, Sk, D), lambda b: (b, 0, 0)),       # encoder output
            pl.BlockSpec((1, Mq, Mk), mask_map),                 # mask
            pl.BlockSpec((D, D), lambda b: (0, 0)),              # Wq (bf16)
            pl.BlockSpec((1, D), lambda b: (0, 0)),              # bq
            pl.BlockSpec((D, 2 * D), lambda b: (0, 0)),          # Wkv (bf16)
            pl.BlockSpec((1, 2 * D), lambda b: (0, 0)),          # bkv
            pl.BlockSpec((D, D), lambda b: (0, 0)),              # Wo (bf16)
            pl.BlockSpec((1, D), lambda b: (0, 0)),              # bo
        ],
        out_specs=pl.BlockSpec((1, Sq, D), lambda b: (b, 0, 0)),
        compiler_params=_PARALLEL_1D,
    )(x, enc, mask3, p["wq"], p["bq"], p["wkv"], p["bkv"], p["wo"], p["bo"])


def ffn_block(x2d, p):
    M, D = x2d.shape
    dff = p["w1"].shape[1]
    tm = _row_tile(M)
    return pl.pallas_call(
        _ffn_block_kernel,
        out_shape=jax.ShapeDtypeStruct((M, D), jnp.float32),
        grid=(M // tm,),
        in_specs=[
            pl.BlockSpec((tm, D), lambda i: (i, 0)),
            pl.BlockSpec((D, dff), lambda i: (0, 0)),
            pl.BlockSpec((1, dff), lambda i: (0, 0)),
            pl.BlockSpec((dff, D), lambda i: (0, 0)),
            pl.BlockSpec((1, D), lambda i: (0, 0)),
        ],
        out_specs=pl.BlockSpec((tm, D), lambda i: (i, 0)),
        compiler_params=_PARALLEL_1D,
    )(x2d, p["w1"], p["b1"], p["w2"], p["b2"])


def final_layernorm(x2d):
    M, D = x2d.shape
    tm = _row_tile(M)
    return pl.pallas_call(
        _final_ln_kernel,
        out_shape=jax.ShapeDtypeStruct((M, D), jnp.float32),
        grid=(M // tm,),
        in_specs=[pl.BlockSpec((tm, D), lambda i: (i, 0))],
        out_specs=pl.BlockSpec((tm, D), lambda i: (i, 0)),
        compiler_params=_PARALLEL_1D,
    )(x2d)


# ----------------------------------------------------------------------------
# Model glue: parameter fusion/casting, mask canonicalization, decoder loop
# ----------------------------------------------------------------------------
def prepare_params(layer_params):
    """Fuse Q/K/V (and K/V) weights and pre-cast matmul weights to bf16 once."""
    fused = []
    for p in layer_params:
        sa, ca = p["self_attn"], p["cross_attn"]
        fused.append({
            "sa": {
                "wqkv": jnp.concatenate([sa["wq"], sa["wk"], sa["wv"]],
                                        axis=1).astype(MM_DTYPE),
                "bqkv": jnp.concatenate([sa["bq"], sa["bk"], sa["bv"]]
                                        )[None, :].astype(jnp.float32),
                "wo": sa["wo"].astype(MM_DTYPE),
                "bo": sa["bo"][None, :].astype(jnp.float32),
            },
            "ca": {
                "wq": ca["wq"].astype(MM_DTYPE),
                "bq": ca["bq"][None, :].astype(jnp.float32),
                "wkv": jnp.concatenate([ca["wk"], ca["wv"]],
                                       axis=1).astype(MM_DTYPE),
                "bkv": jnp.concatenate([ca["bk"], ca["bv"]]
                                       )[None, :].astype(jnp.float32),
                "wo": ca["wo"].astype(MM_DTYPE),
                "bo": ca["bo"][None, :].astype(jnp.float32),
            },
            "w1": p["w1"].astype(MM_DTYPE),
            "b1": p["b1"][None, :].astype(jnp.float32),
            "w2": p["w2"].astype(MM_DTYPE),
            "b2": p["b2"][None, :].astype(jnp.float32),
        })
    return fused


def _canon_mask(mask, B):
    """(b,1,q,k) / (b,q,k) / (q,k) torch-style mask -> (mb, mq, mk) float32."""
    m = jnp.asarray(mask, jnp.float32)
    while m.ndim > 3:
        assert m.shape[1] == 1, "per-head masks are not supported"
        m = m[:, 0]
    if m.ndim == 2:
        m = m[None]
    assert m.shape[0] in (1, B)
    return m


def decoder_block(x, enc, src_mask3, tgt_mask3, p, H):
    B, S, D = x.shape
    x = self_attention_block(x, tgt_mask3, p["sa"], H)          # +residual fused
    x = cross_attention_block(x, enc, src_mask3, p["ca"], H)    # +residual fused
    x = ffn_block(x.reshape(B * S, D), p).reshape(B, S, D)      # +residual fused
    return x


def decoder_forward(x, encoder_output, src_mask, tgt_mask, layer_params, H):
    B, S, D = x.shape
    assert D % H == 0
    fused = prepare_params(layer_params)
    tgt3 = _canon_mask(tgt_mask, B)
    src3 = _canon_mask(src_mask, B)
    for p in fused:
        x = decoder_block(x, encoder_output, src3, tgt3, p, H)
    return final_layernorm(x.reshape(B * S, D)).reshape(B, S, D)


# ----------------------------------------------------------------------------
# Pure-JAX f32 reference for verification (mirrors the PyTorch module)
# ----------------------------------------------------------------------------
def ref_layernorm(x):
    mean = jnp.mean(x, axis=-1, keepdims=True)
    std = jnp.std(x, axis=-1, keepdims=True, ddof=1)
    return LN_ALPHA * (x - mean) / (std + EPS) + LN_BIAS


def ref_mha(q_in, k_in, v_in, mask, p, H):
    B, Sq, D = q_in.shape
    dk = D // H

    def proj(x, w, b):
        return (x @ w + b).reshape(x.shape[0], x.shape[1], H, dk).transpose(0, 2, 1, 3)

    q = proj(q_in, p["wq"], p["bq"])
    k = proj(k_in, p["wk"], p["bk"])
    v = proj(v_in, p["wv"], p["bv"])
    s = jnp.einsum("bhqd,bhkd->bhqk", q, k) / (dk ** 0.5)
    s = jnp.where(mask == 0, NEG_INF, s)
    a = jax.nn.softmax(s, axis=-1)
    o = jnp.einsum("bhqk,bhkd->bhqd", a, v).transpose(0, 2, 1, 3).reshape(B, Sq, D)
    return o @ p["wo"] + p["bo"]


def ref_decoder(x, enc, src_mask, tgt_mask, layer_params, H):
    for p in layer_params:
        n = ref_layernorm(x)
        x = x + ref_mha(n, n, n, tgt_mask, p["self_attn"], H)
        n = ref_layernorm(x)
        x = x + ref_mha(n, enc, enc, src_mask, p["cross_attn"], H)
        n = ref_layernorm(x)
        x = x + jnp.maximum(n @ p["w1"] + p["b1"], 0.0) @ p["w2"] + p["b2"]
    return ref_layernorm(x)


# ----------------------------------------------------------------------------
# Deterministic parameter init (mirrors the torch module's parameter set)
# ----------------------------------------------------------------------------
def init_params(key, n_layers, D, d_ff):
    def lin(k, fan_in, fan_out):
        kw, kb = jax.random.split(k)
        w = jax.random.normal(kw, (fan_in, fan_out), jnp.float32) * (fan_in ** -0.5)
        b = jax.random.normal(kb, (fan_out,), jnp.float32) * 0.01
        return w, b

    layers = []
    for l in range(n_layers):
        ks = jax.random.split(jax.random.fold_in(key, l), 10)
        sa, ca = {}, {}
        sa["wq"], sa["bq"] = lin(ks[0], D, D)
        sa["wk"], sa["bk"] = lin(ks[1], D, D)
        sa["wv"], sa["bv"] = lin(ks[2], D, D)
        sa["wo"], sa["bo"] = lin(ks[3], D, D)
        ca["wq"], ca["bq"] = lin(ks[4], D, D)
        ca["wk"], ca["bk"] = lin(ks[5], D, D)
        ca["wv"], ca["bv"] = lin(ks[6], D, D)
        ca["wo"], ca["bo"] = lin(ks[7], D, D)
        w1, b1 = lin(ks[8], D, d_ff)
        w2, b2 = lin(ks[9], d_ff, D)
        layers.append({"self_attn": sa, "cross_attn": ca,
                       "w1": w1, "b1": b1, "w2": w2, "b2": b2})
    return layers


# ----------------------------------------------------------------------------
if __name__ == "__main__":
    B, S, D, H, D_FF, N_LAYERS = 2, 8, 32, 4, 64, 2

    key = jax.random.PRNGKey(0)
    kx, kenc, kp = jax.random.split(key, 3)
    x = jax.random.normal(kx, (B, S, D), jnp.float32)
    encoder_output = jax.random.normal(kenc, (B, S, D), jnp.float32)
    # causal target mask (1,1,S,S) and all-ones source mask (B,1,1,S)
    tgt_mask = jnp.tril(jnp.ones((S, S), jnp.float32))[None, None]
    src_mask = jnp.ones((B, 1, 1, S), jnp.float32)

    params = init_params(kp, N_LAYERS, D, D_FF)

    out = decoder_forward(x, encoder_output, src_mask, tgt_mask, params, H)
    out = jax.block_until_ready(out)

    ref = ref_decoder(x, encoder_output, src_mask, tgt_mask, params, H)
    assert out.shape == (B, S, D)
    max_err = float(jnp.max(jnp.abs(out - ref)))
    # tolerance accounts for bf16 MXU inputs (f32 accumulation) vs f32 reference
    assert jnp.allclose(out, ref, atol=4e-2, rtol=4e-2), (
        f"mismatch vs reference (max |err| = {max_err:.4f})")

    print("KERNEL_OK")
</pallas_src>

<mosaic_0001>
module attributes {stable_mosaic.version = 11 : i64} {
  func.func @_self_attn_block_kernel(%arg0: i32, %arg1: memref<1x8x32xf32, #tpu.memory_space<vmem>>, %arg2: memref<1x8x8xf32, #tpu.memory_space<vmem>>, %arg3: memref<32x96xbf16, #tpu.memory_space<vmem>>, %arg4: memref<1x96xf32, #tpu.memory_space<vmem>>, %arg5: memref<32x32xbf16, #tpu.memory_space<vmem>>, %arg6: memref<1x32xf32, #tpu.memory_space<vmem>>, %arg7: memref<1x8x32xf32, #tpu.memory_space<vmem>>) attributes {dimension_semantics = [#tpu.dimension_semantics<parallel>], iteration_bounds = array<i64: 2>, scalar_prefetch = 0 : i64, scratch_operands = 0 : i64, tpu.core_type = #tpu.core_type<tc>, window_params = [{transform_indices = @transform_0, window_bounds = array<i64: 1, 8, 32>}, {pipeline_mode = #tpu.pipeline_mode<synchronous>, transform_indices = @transform_1, window_bounds = array<i64: 1, 8, 8>}, {pipeline_mode = #tpu.pipeline_mode<synchronous>, transform_indices = @transform_2, window_bounds = array<i64: 32, 96>}, {pipeline_mode = #tpu.pipeline_mode<synchronous>, transform_indices = @transform_3, window_bounds = array<i64: 1, 96>}, {pipeline_mode = #tpu.pipeline_mode<synchronous>, transform_indices = @transform_4, window_bounds = array<i64: 32, 32>}, {pipeline_mode = #tpu.pipeline_mode<synchronous>, transform_indices = @transform_5, window_bounds = array<i64: 1, 32>}, {transform_indices = @transform_6, window_bounds = array<i64: 1, 8, 32>}]} {
    %c0 = arith.constant 0 : index
    %c0_0 = arith.constant 0 : index
    %c0_1 = arith.constant 0 : index
    %0 = vector.load %arg1[%c0, %c0_0, %c0_1] : memref<1x8x32xf32, #tpu.memory_space<vmem>>, vector<1x8x32xf32>
    %1 = vector.shape_cast %0 : vector<1x8x32xf32> to vector<8x32xf32>
    %cst = arith.constant dense<0.000000e+00> : vector<8xf32>
    %2 = vector.multi_reduction <add>, %1, %cst [1] : vector<8x32xf32> to vector<8xf32>
    %3 = vector.shape_cast %2 : vector<8xf32> to vector<8x1xf32>
    %cst_2 = arith.constant 3.200000e+01 : f32
    %4 = vector.broadcast %cst_2 : f32 to vector<8x1xf32>
    %5 = arith.divf %3, %4 : vector<8x1xf32>
    %6 = vector.broadcast %5 : vector<8x1xf32> to vector<8x32xf32>
    %7 = arith.subf %1, %6 : vector<8x32xf32>
    %8 = arith.mulf %7, %7 : vector<8x32xf32>
    %cst_3 = arith.constant dense<0.000000e+00> : vector<8xf32>
    %9 = vector.multi_reduction <add>, %8, %cst_3 [1] : vector<8x32xf32> to vector<8xf32>
    %10 = vector.shape_cast %9 : vector<8xf32> to vector<8x1xf32>
    %cst_4 = arith.constant 3.100000e+01 : f32
    %11 = vector.broadcast %cst_4 : f32 to vector<8x1xf32>
    %12 = arith.divf %10, %11 : vector<8x1xf32>
    %13 = math.sqrt %12 : vector<8x1xf32>
    %cst_5 = arith.constant 9.99999997E-7 : f32
    %14 = vector.broadcast %cst_5 : f32 to vector<8x1xf32>
    %15 = arith.addf %13, %14 : vector<8x1xf32>
    %16 = vector.broadcast %15 : vector<8x1xf32> to vector<8x32xf32>
    %17 = arith.divf %7, %16 : vector<8x32xf32>
    %cst_6 = arith.constant 1.000000e+00 : f32
    %18 = vector.broadcast %cst_6 : f32 to vector<8x32xf32>
    %19 = arith.mulf %18, %17 : vector<8x32xf32>
    %cst_7 = arith.constant 0.000000e+00 : f32
    %20 = vector.broadcast %cst_7 : f32 to vector<8x32xf32>
    %21 = arith.addf %19, %20 : vector<8x32xf32>
    %22 = arith.truncf %21 : vector<8x32xf32> to vector<8x32xbf16>
    %c0_8 = arith.constant 0 : index
    %c0_9 = arith.constant 0 : index
    %23 = vector.load %arg3[%c0_8, %c0_9] : memref<32x96xbf16, #tpu.memory_space<vmem>>, vector<32x96xbf16>
    %cst_10 = arith.constant dense<0.000000e+00> : vector<8x96xf32>
    %24 = tpu.matmul %22, %23, %cst_10 {dimension_numbers = #tpu.dot_dimension_numbers<[1], [0], [0], [1], [0, 0, 1, 1], [], []>} : vector<8x32xbf16>, vector<32x96xbf16>, vector<8x96xf32> -> vector<8x96xf32>
    %c0_11 = arith.constant 0 : index
    %c0_12 = arith.constant 0 : index
    %25 = vector.load %arg4[%c0_11, %c0_12] : memref<1x96xf32, #tpu.memory_space<vmem>>, vector<1x96xf32>
    %26 = vector.broadcast %25 : vector<1x96xf32> to vector<8x96xf32>
    %27 = arith.addf %24, %26 : vector<8x96xf32>
    %28 = vector.extract_strided_slice %27 {offsets = [0, 0], sizes = [8, 32], strides = [1, 1]} : vector<8x96xf32> to vector<8x32xf32>
    %29 = vector.extract_strided_slice %27 {offsets = [0, 32], sizes = [8, 32], strides = [1, 1]} : vector<8x96xf32> to vector<8x32xf32>
    %30 = vector.extract_strided_slice %27 {offsets = [0, 64], sizes = [8, 32], strides = [1, 1]} : vector<8x96xf32> to vector<8x32xf32>
    %c0_13 = arith.constant 0 : index
    %c0_14 = arith.constant 0 : index
    %c0_15 = arith.constant 0 : index
    %31 = vector.load %arg2[%c0_13, %c0_14, %c0_15] : memref<1x8x8xf32, #tpu.memory_space<vmem>>, vector<1x8x8xf32>
    %32 = vector.shape_cast %31 : vector<1x8x8xf32> to vector<8x8xf32>
    %c0_16 = arith.constant 0 : index
    %c0_17 = arith.constant 0 : index
    %33 = vector.load %arg5[%c0_16, %c0_17] : memref<32x32xbf16, #tpu.memory_space<vmem>>, vector<32x32xbf16>
    %cst_18 = arith.constant 0.000000e+00 : f32
    %34 = vector.broadcast %cst_18 : f32 to vector<8x8xf32>
    %35 = arith.cmpf one, %32, %34 : vector<8x8xf32>
    %cst_19 = arith.constant 0.000000e+00 : f32
    %36 = vector.broadcast %cst_19 : f32 to vector<8x32xf32>
    %37 = vector.extract_strided_slice %28 {offsets = [0, 0], sizes = [8, 8], strides = [1, 1]} : vector<8x32xf32> to vector<8x8xf32>
    %38 = arith.truncf %37 : vector<8x8xf32> to vector<8x8xbf16>
    %39 = vector.extract_strided_slice %29 {offsets = [0, 0], sizes = [8, 8], strides = [1, 1]} : vector<8x32xf32> to vector<8x8xf32>
    %40 = arith.truncf %39 : vector<8x8xf32> to vector<8x8xbf16>
    %41 = vector.extract_strided_slice %30 {offsets = [0, 0], sizes = [8, 8], strides = [1, 1]} : vector<8x32xf32> to vector<8x8xf32>
    %42 = arith.truncf %41 : vector<8x8xf32> to vector<8x8xbf16>
    %cst_20 = arith.constant dense<0.000000e+00> : vector<8x8xf32>
    %43 = tpu.matmul %38, %40, %cst_20 {dimension_numbers = #tpu.dot_dimension_numbers<[1], [1], [0], [0], [0, 0, 1, 0], [], []>} : vector<8x8xbf16>, vector<8x8xbf16>, vector<8x8xf32> -> vector<8x8xf32>
    %cst_21 = arith.constant 0.353553385 : f32
    %44 = vector.broadcast %cst_21 : f32 to vector<8x8xf32>
    %45 = arith.mulf %43, %44 : vector<8x8xf32>
    %cst_22 = arith.constant -1.000000e+09 : f32
    %46 = vector.broadcast %cst_22 : f32 to vector<8x8xf32>
    %47 = arith.select %35, %45, %46 : vector<8x8xi1>, vector<8x8xf32>
    %cst_23 = arith.constant dense<0xFF800000> : vector<8xf32>
    %48 = vector.multi_reduction <maximumf>, %47, %cst_23 [1] : vector<8x8xf32> to vector<8xf32>
    %49 = vector.shape_cast %48 : vector<8xf32> to vector<8x1xf32>
    %50 = vector.broadcast %49 : vector<8x1xf32> to vector<8x8xf32>
    %51 = arith.subf %47, %50 : vector<8x8xf32>
    %52 = math.exp %51 : vector<8x8xf32>
    %cst_24 = arith.constant dense<0.000000e+00> : vector<8xf32>
    %53 = vector.multi_reduction <add>, %52, %cst_24 [1] : vector<8x8xf32> to vector<8xf32>
    %54 = vector.shape_cast %53 : vector<8xf32> to vector<8x1xf32>
    %55 = tpu.reciprocal %54 {approx = true} : vector<8x1xf32> -> vector<8x1xf32>
    %56 = vector.broadcast %55 : vector<8x1xf32> to vector<8x8xf32>
    %57 = arith.mulf %52, %56 : vector<8x8xf32>
    %58 = arith.truncf %57 : vector<8x8xf32> to vector<8x8xbf16>
    %cst_25 = arith.constant dense<0.000000e+00> : vector<8x8xf32>
    %59 = tpu.matmul %58, %42, %cst_25 {dimension_numbers = #tpu.dot_dimension_numbers<[1], [0], [0], [1], [0, 0, 1, 1], [], []>} : vector<8x8xbf16>, vector<8x8xbf16>, vector<8x8xf32> -> vector<8x8xf32>
    %60 = arith.truncf %59 : vector<8x8xf32> to vector<8x8xbf16>
    %61 = vector.extract_strided_slice %33 {offsets = [0, 0], sizes = [8, 32], strides = [1, 1]} : vector<32x32xbf16> to vector<8x32xbf16>
    %cst_26 = arith.constant dense<0.000000e+00> : vector<8x32xf32>
    %62 = tpu.matmul %60, %61, %cst_26 {dimension_numbers = #tpu.dot_dimension_numbers<[1], [0], [0], [1], [0, 0, 1, 1], [], []>} : vector<8x8xbf16>, vector<8x32xbf16>, vector<8x32xf32> -> vector<8x32xf32>
    %63 = arith.addf %36, %62 : vector<8x32xf32>
    %64 = vector.extract_strided_slice %28 {offsets = [0, 8], sizes = [8, 8], strides = [1, 1]} : vector<8x32xf32> to vector<8x8xf32>
    %65 = arith.truncf %64 : vector<8x8xf32> to vector<8x8xbf16>
    %66 = vector.extract_strided_slice %29 {offsets = [0, 8], sizes = [8, 8], strides = [1, 1]} : vector<8x32xf32> to vector<8x8xf32>
    %67 = arith.truncf %66 : vector<8x8xf32> to vector<8x8xbf16>
    %68 = vector.extract_strided_slice %30 {offsets = [0, 8], sizes = [8, 8], strides = [1, 1]} : vector<8x32xf32> to vector<8x8xf32>
    %69 = arith.truncf %68 : vector<8x8xf32> to vector<8x8xbf16>
    %cst_27 = arith.constant dense<0.000000e+00> : vector<8x8xf32>
    %70 = tpu.matmul %65, %67, %cst_27 {dimension_numbers = #tpu.dot_dimension_numbers<[1], [1], [0], [0], [0, 0, 1, 0], [], []>} : vector<8x8xbf16>, vector<8x8xbf16>, vector<8x8xf32> -> vector<8x8xf32>
    %cst_28 = arith.constant 0.353553385 : f32
    %71 = vector.broadcast %cst_28 : f32 to vector<8x8xf32>
    %72 = arith.mulf %70, %71 : vector<8x8xf32>
    %cst_29 = arith.constant -1.000000e+09 : f32
    %73 = vector.broadcast %cst_29 : f32 to vector<8x8xf32>
    %74 = arith.select %35, %72, %73 : vector<8x8xi1>, vector<8x8xf32>
    %cst_30 = arith.constant dense<0xFF800000> : vector<8xf32>
    %75 = vector.multi_reduction <maximumf>, %74, %cst_30 [1] : vector<8x8xf32> to vector<8xf32>
    %76 = vector.shape_cast %75 : vector<8xf32> to vector<8x1xf32>
    %77 = vector.broadcast %76 : vector<8x1xf32> to vector<8x8xf32>
    %78 = arith.subf %74, %77 : vector<8x8xf32>
    %79 = math.exp %78 : vector<8x8xf32>
    %cst_31 = arith.constant dense<0.000000e+00> : vector<8xf32>
    %80 = vector.multi_reduction <add>, %79, %cst_31 [1] : vector<8x8xf32> to vector<8xf32>
    %81 = vector.shape_cast %80 : vector<8xf32> to vector<8x1xf32>
    %82 = tpu.reciprocal %81 {approx = true} : vector<8x1xf32> -> vector<8x1xf32>
    %83 = vector.broadcast %82 : vector<8x1xf32> to vector<8x8xf32>
    %84 = arith.mulf %79, %83 : vector<8x8xf32>
    %85 = arith.truncf %84 : vector<8x8xf32> to vector<8x8xbf16>
    %cst_32 = arith.constant dense<0.000000e+00> : vector<8x8xf32>
    %86 = tpu.matmul %85, %69, %cst_32 {dimension_numbers = #tpu.dot_dimension_numbers<[1], [0], [0], [1], [0, 0, 1, 1], [], []>} : vector<8x8xbf16>, vector<8x8xbf16>, vector<8x8xf32> -> vector<8x8xf32>
    %87 = arith.truncf %86 : vector<8x8xf32> to vector<8x8xbf16>
    %88 = vector.extract_strided_slice %33 {offsets = [8, 0], sizes = [8, 32], strides = [1, 1]} : vector<32x32xbf16> to vector<8x32xbf16>
    %cst_33 = arith.constant dense<0.000000e+00> : vector<8x32xf32>
    %89 = tpu.matmul %87, %88, %cst_33 {dimension_numbers = #tpu.dot_dimension_numbers<[1], [0], [0], [1], [0, 0, 1, 1], [], []>} : vector<8x8xbf16>, vector<8x32xbf16>, vector<8x32xf32> -> vector<8x32xf32>
    %90 = arith.addf %63, %89 : vector<8x32xf32>
    %91 = vector.extract_strided_slice %28 {offsets = [0, 16], sizes = [8, 8], strides = [1, 1]} : vector<8x32xf32> to vector<8x8xf32>
    %92 = arith.truncf %91 : vector<8x8xf32> to vector<8x8xbf16>
    %93 = vector.extract_strided_slice %29 {offsets = [0, 16], sizes = [8, 8], strides = [1, 1]} : vector<8x32xf32> to vector<8x8xf32>
    %94 = arith.truncf %93 : vector<8x8xf32> to vector<8x8xbf16>
    %95 = vector.extract_strided_slice %30 {offsets = [0, 16], sizes = [8, 8], strides = [1, 1]} : vector<8x32xf32> to vector<8x8xf32>
    %96 = arith.truncf %95 : vector<8x8xf32> to vector<8x8xbf16>
    %cst_34 = arith.constant dense<0.000000e+00> : vector<8x8xf32>
    %97 = tpu.matmul %92, %94, %cst_34 {dimension_numbers = #tpu.dot_dimension_numbers<[1], [1], [0], [0], [0, 0, 1, 0], [], []>} : vector<8x8xbf16>, vector<8x8xbf16>, vector<8x8xf32> -> vector<8x8xf32>
    %cst_35 = arith.constant 0.353553385 : f32
    %98 = vector.broadcast %cst_35 : f32 to vector<8x8xf32>
    %99 = arith.mulf %97, %98 : vector<8x8xf32>
    %cst_36 = arith.constant -1.000000e+09 : f32
    %100 = vector.broadcast %cst_36 : f32 to vector<8x8xf32>
    %101 = arith.select %35, %99, %100 : vector<8x8xi1>, vector<8x8xf32>
    %cst_37 = arith.constant dense<0xFF800000> : vector<8xf32>
    %102 = vector.multi_reduction <maximumf>, %101, %cst_37 [1] : vector<8x8xf32> to vector<8xf32>
    %103 = vector.shape_cast %102 : vector<8xf32> to vector<8x1xf32>
    %104 = vector.broadcast %103 : vector<8x1xf32> to vector<8x8xf32>
    %105 = arith.subf %101, %104 : vector<8x8xf32>
    %106 = math.exp %105 : vector<8x8xf32>
    %cst_38 = arith.constant dense<0.000000e+00> : vector<8xf32>
    %107 = vector.multi_reduction <add>, %106, %cst_38 [1] : vector<8x8xf32> to vector<8xf32>
    %108 = vector.shape_cast %107 : vector<8xf32> to vector<8x1xf32>
    %109 = tpu.reciprocal %108 {approx = true} : vector<8x1xf32> -> vector<8x1xf32>
    %110 = vector.broadcast %109 : vector<8x1xf32> to vector<8x8xf32>
    %111 = arith.mulf %106, %110 : vector<8x8xf32>
    %112 = arith.truncf %111 : vector<8x8xf32> to vector<8x8xbf16>
    %cst_39 = arith.constant dense<0.000000e+00> : vector<8x8xf32>
    %113 = tpu.matmul %112, %96, %cst_39 {dimension_numbers = #tpu.dot_dimension_numbers<[1], [0], [0], [1], [0, 0, 1, 1], [], []>} : vector<8x8xbf16>, vector<8x8xbf16>, vector<8x8xf32> -> vector<8x8xf32>
    %114 = arith.truncf %113 : vector<8x8xf32> to vector<8x8xbf16>
    %115 = vector.extract_strided_slice %33 {offsets = [16, 0], sizes = [8, 32], strides = [1, 1]} : vector<32x32xbf16> to vector<8x32xbf16>
    %cst_40 = arith.constant dense<0.000000e+00> : vector<8x32xf32>
    %116 = tpu.matmul %114, %115, %cst_40 {dimension_numbers = #tpu.dot_dimension_numbers<[1], [0], [0], [1], [0, 0, 1, 1], [], []>} : vector<8x8xbf16>, vector<8x32xbf16>, vector<8x32xf32> -> vector<8x32xf32>
    %117 = arith.addf %90, %116 : vector<8x32xf32>
    %118 = vector.extract_strided_slice %28 {offsets = [0, 24], sizes = [8, 8], strides = [1, 1]} : vector<8x32xf32> to vector<8x8xf32>
    %119 = arith.truncf %118 : vector<8x8xf32> to vector<8x8xbf16>
    %120 = vector.extract_strided_slice %29 {offsets = [0, 24], sizes = [8, 8], strides = [1, 1]} : vector<8x32xf32> to vector<8x8xf32>
    %121 = arith.truncf %120 : vector<8x8xf32> to vector<8x8xbf16>
    %122 = vector.extract_strided_slice %30 {offsets = [0, 24], sizes = [8, 8], strides = [1, 1]} : vector<8x32xf32> to vector<8x8xf32>
    %123 = arith.truncf %122 : vector<8x8xf32> to vector<8x8xbf16>
    %cst_41 = arith.constant dense<0.000000e+00> : vector<8x8xf32>
    %124 = tpu.matmul %119, %121, %cst_41 {dimension_numbers = #tpu.dot_dimension_numbers<[1], [1], [0], [0], [0, 0, 1, 0], [], []>} : vector<8x8xbf16>, vector<8x8xbf16>, vector<8x8xf32> -> vector<8x8xf32>
    %cst_42 = arith.constant 0.353553385 : f32
    %125 = vector.broadcast %cst_42 : f32 to vector<8x8xf32>
    %126 = arith.mulf %124, %125 : vector<8x8xf32>
    %cst_43 = arith.constant -1.000000e+09 : f32
    %127 = vector.broadcast %cst_43 : f32 to vector<8x8xf32>
    %128 = arith.select %35, %126, %127 : vector<8x8xi1>, vector<8x8xf32>
    %cst_44 = arith.constant dense<0xFF800000> : vector<8xf32>
    %129 = vector.multi_reduction <maximumf>, %128, %cst_44 [1] : vector<8x8xf32> to vector<8xf32>
    %130 = vector.shape_cast %129 : vector<8xf32> to vector<8x1xf32>
    %131 = vector.broadcast %130 : vector<8x1xf32> to vector<8x8xf32>
    %132 = arith.subf %128, %131 : vector<8x8xf32>
    %133 = math.exp %132 : vector<8x8xf32>
    %cst_45 = arith.constant dense<0.000000e+00> : vector<8xf32>
    %134 = vector.multi_reduction <add>, %133, %cst_45 [1] : vector<8x8xf32> to vector<8xf32>
    %135 = vector.shape_cast %134 : vector<8xf32> to vector<8x1xf32>
    %136 = tpu.reciprocal %135 {approx = true} : vector<8x1xf32> -> vector<8x1xf32>
    %137 = vector.broadcast %136 : vector<8x1xf32> to vector<8x8xf32>
    %138 = arith.mulf %133, %137 : vector<8x8xf32>
    %139 = arith.truncf %138 : vector<8x8xf32> to vector<8x8xbf16>
    %cst_46 = arith.constant dense<0.000000e+00> : vector<8x8xf32>
    %140 = tpu.matmul %139, %123, %cst_46 {dimension_numbers = #tpu.dot_dimension_numbers<[1], [0], [0], [1], [0, 0, 1, 1], [], []>} : vector<8x8xbf16>, vector<8x8xbf16>, vector<8x8xf32> -> vector<8x8xf32>
    %141 = arith.truncf %140 : vector<8x8xf32> to vector<8x8xbf16>
    %142 = vector.extract_strided_slice %33 {offsets = [24, 0], sizes = [8, 32], strides = [1, 1]} : vector<32x32xbf16> to vector<8x32xbf16>
    %cst_47 = arith.constant dense<0.000000e+00> : vector<8x32xf32>
    %143 = tpu.matmul %141, %142, %cst_47 {dimension_numbers = #tpu.dot_dimension_numbers<[1], [0], [0], [1], [0, 0, 1, 1], [], []>} : vector<8x8xbf16>, vector<8x32xbf16>, vector<8x32xf32> -> vector<8x32xf32>
    %144 = arith.addf %117, %143 : vector<8x32xf32>
    %145 = arith.addf %1, %144 : vector<8x32xf32>
    %c0_48 = arith.constant 0 : index
    %c0_49 = arith.constant 0 : index
    %146 = vector.load %arg6[%c0_48, %c0_49] : memref<1x32xf32, #tpu.memory_space<vmem>>, vector<1x32xf32>
    %147 = vector.broadcast %146 : vector<1x32xf32> to vector<8x32xf32>
    %148 = arith.addf %145, %147 : vector<8x32xf32>
    %c0_50 = arith.constant 0 : index
    %c0_51 = arith.constant 0 : index
    %c0_52 = arith.constant 0 : index
    %149 = vector.load %arg7[%c0_50, %c0_51, %c0_52] : memref<1x8x32xf32, #tpu.memory_space<vmem>>, vector<1x8x32xf32>
    %150 = vector.shape_cast %149 : vector<1x8x32xf32> to vector<8x32xf32>
    %151 = vector.shape_cast %148 : vector<8x32xf32> to vector<1x8x32xf32>
    tpu.vector_store %arg7[%c0_50, %c0_51, %c0_52], %151 {strides = array<i32>} : memref<1x8x32xf32, #tpu.memory_space<vmem>>, vector<1x8x32xf32>,
    return
  }
  func.func @transform_0(%arg0: i32) -> (i32, i32, i32) {
    %c0_i32 = arith.constant 0 : i32
    %c0_i32_0 = arith.constant 0 : i32
    %c0_i32_1 = arith.constant 0 : i32
    return %arg0, %c0_i32, %c0_i32_0 : i32, i32, i32
  }
  func.func @transform_1(%arg0: i32) -> (i32, i32, i32) {
    %c0_i32 = arith.constant 0 : i32
    %c0_i32_0 = arith.constant 0 : i32
    %c0_i32_1 = arith.constant 0 : i32
    %c0_i32_2 = arith.constant 0 : i32
    return %c0_i32, %c0_i32_0, %c0_i32_1 : i32, i32, i32
  }
  func.func @transform_2(%arg0: i32) -> (i32, i32) {
    %c0_i32 = arith.constant 0 : i32
    %c0_i32_0 = arith.constant 0 : i32
    %c0_i32_1 = arith.constant 0 : i32
    return %c0_i32, %c0_i32_0 : i32, i32
  }
  func.func @transform_3(%arg0: i32) -> (i32, i32) {
    %c0_i32 = arith.constant 0 : i32
    %c0_i32_0 = arith.constant 0 : i32
    %c0_i32_1 = arith.constant 0 : i32
    return %c0_i32, %c0_i32_0 : i32, i32
  }
  func.func @transform_4(%arg0: i32) -> (i32, i32) {
    %c0_i32 = arith.constant 0 : i32
    %c0_i32_0 = arith.constant 0 : i32
    %c0_i32_1 = arith.constant 0 : i32
    return %c0_i32, %c0_i32_0 : i32, i32
  }
  func.func @transform_5(%arg0: i32) -> (i32, i32) {
    %c0_i32 = arith.constant 0 : i32
    %c0_i32_0 = arith.constant 0 : i32
    %c0_i32_1 = arith.constant 0 : i32
    return %c0_i32, %c0_i32_0 : i32, i32
  }
  func.func @transform_6(%arg0: i32) -> (i32, i32, i32) {
    %c0_i32 = arith.constant 0 : i32
    %c0_i32_0 = arith.constant 0 : i32
    %c0_i32_1 = arith.constant 0 : i32
    return %arg0, %c0_i32, %c0_i32_0 : i32, i32, i32
  }
}

</mosaic_0001>

<llo_original>
// kernel: tpu_custom_call.1
$region0: #{tpu_custom_call.1}
  #allocation0 [shape = 'u32[]', space=smem, size = 0x4, offset = 0x4, fixed_abs, tag = 'smem constant byte address 0x4 - core index']
  #allocation1 [shape = 'u32[144,128]{1,0:T(1,128)}', space=vmem, size = 0x12000, scoped, tag = 'internal scratch']
  %s0 = inlined_call_operand.hbm [shape: f32[2,8,32], index: 0, kind: input, shape index: {}]
  %s1 = inlined_call_operand.hbm [shape: f32[1,8,8], index: 1, kind: input, shape index: {}]
  %s2 = inlined_call_operand.hbm [shape: bf16[32,96], index: 2, kind: input, shape index: {}]
  %s3 = inlined_call_operand.vmem [shape: f32[1,96], index: 3, kind: input, shape index: {}]
  %s4 = inlined_call_operand.hbm [shape: bf16[32,32], index: 4, kind: input, shape index: {}]
  %s5 = inlined_call_operand.vmem [shape: f32[1,32], index: 5, kind: input, shape index: {}]
  %s6 = inlined_call_operand.hbm [shape: f32[2,8,32], index: 6, kind: output, shape index: {}]
  %s7 = sld [smem:[#allocation0]]
  $region73: #{tpu_custom_call.1} parent=0
    _
  %s9 = ssub.s32 1, %s7
  %s10 = scalar_select 0, %s9, %s7
  $region1: #{tpu_custom_call.1} parent=0
    #allocation2 [shape = 'u8[8192]{0}', space=vmem, size = 0x2000, scoped, tag = 'input window, operand 0']
    #allocation3 [shape = 's32[2]{0}', space=sflag, size = 0x8, scoped, tag = 'scoped memory for tpu_custom_call.1']
    #allocation4 [shape = 's32[2]{0}', space=sflag, size = 0x8, scoped, tag = 'scoped memory for tpu_custom_call.1']
    #allocation5 [shape = 'u8[4096]{0}', space=vmem, size = 0x1000, scoped, tag = 'input window, operand 1, single buffered']
    #allocation6 [shape = 's32[1]{0}', space=sflag, size = 0x4, scoped, tag = 'scoped memory for tpu_custom_call.1']
    #allocation7 [shape = 'u8[8192]{0}', space=vmem, size = 0x2000, scoped, tag = 'input window, operand 2, single buffered']
    #allocation8 [shape = 'u8[8192]{0}', space=vmem, size = 0x2000, scoped, tag = 'input window, operand 4, single buffered']
    #allocation9 [shape = 's32[1]{0}', space=sflag, size = 0x4, scoped, tag = 'scoped memory for tpu_custom_call.1']
    #allocation10 [shape = 'u8[8192]{0}', space=vmem, size = 0x2000, scoped, tag = 'output window, operand 0']
    %11 = vsyncpa [#allocation3], 0
    %s12 = scalar_lea.sflag [#allocation3], 1
    %13 = vsyncpa %s12, 0
    %14 = vsyncpa [#allocation6], 0
    %15 = vsyncpa [#allocation9], 0
    %16 = vsyncpa [#allocation4], 0
    %s17 = scalar_lea.sflag [#allocation4], 1
    %18 = vsyncpa %s17, 0
    loop: start=0, step=1, limit=4
    $region2: #{tpu_custom_call.1} parent=1 // loop_pre_header
      _
    $region3: #{tpu_custom_call.1} parent=1 // loop_header
      %s20 = sphi 0, %s24
      %p21 = scmp.ge.s32.totalorder %s20, 4
      %s30 = sphi 0, %s32
      %s33 = sphi 0, %s30
      %s34 = sphi 0, %s33
      %s50 = sphi 0, %s34
      %s54 = sphi 0, %s54
      %s56 = sphi 0, %s54
      %s57 = sphi 0, %s56
      %s71 = sphi 0, %s57
      %s75 = sphi 0, %s75
      %s77 = sphi 0, %s75
      %s78 = sphi 0, %s77
      %s92 = sphi 0, %s78
      %s96 = sphi 0, %s96
      %s98 = sphi 0, %s96
      %s99 = sphi 0, %s98
      %s113 = sphi 0, %s99
      %s117 = sphi 0, %s117
      %s119 = sphi 0, %s117
      %s120 = sphi 0, %s119
      %s134 = sphi 0, %s120
      %s138 = sphi 0, %s138
      %s140 = sphi 0, %s138
      %s141 = sphi 0, %s140
      %s155 = sphi 0, %s141
      %s161 = sphi 0, %s163
      %s164 = sphi 0, %s161
      %s165 = sphi 0, %s164
      %s181 = sphi 0, %s165
    $region4: #{tpu_custom_call.1} parent=1 // loop_header_branch
      %23 = sbr.rel (%p21) target = $region8
    $region5: #{tpu_custom_call.1} parent=1 // loop_body
      %s25 = ssub.s32 %s20, 1
      %s26 = ssub.s32 %s20, 2
      %s27 = sadd.s32 %s20, 1
      %s28 = ssub.s32 %s20, %s27
      %p29 = scmp.eq.s32.totalorder %s28, 0
      %s31 = sadd.s32 %s30, 1
      %s32 = scalar_select %p29, %s30, %s31
      %p35 = pneg %p29
      %p36 = scmp.eq.s32.totalorder %s20, 1
      %p37 = por %p35, %p36
      %p38 = scmp.ne.s32.totalorder %s30, %s33
      %p39 = scmp.eq.s32.totalorder %s20, 0
      %p40 = por %p38, %p39
      %p41 = scmp.ne.s32.totalorder %s30, %s33
      %p42 = scmp.eq.s32.totalorder %s25, 1
      %p43 = por %p41, %p42
      %p44 = scmp.ne.s32.totalorder %s33, %s34
      %p45 = scmp.eq.s32.totalorder %s25, 0
      %p46 = por %p44, %p45
      %p47 = scmp.ne.s32.totalorder %s33, %s34
      %p48 = scmp.eq.s32.totalorder %s26, 1
      %p49 = por %p47, %p48
      %p51 = scmp.ne.s32.totalorder %s34, %s50
      %p52 = scmp.eq.s32.totalorder %s26, 0
      %p53 = por %p51, %p52
      %s55 = sadd.s32 %s54, 1
      %p58 = scmp.eq.s32.totalorder %s20, 1
      %p59 = scmp.ne.s32.totalorder %s54, %s56
      %p60 = scmp.eq.s32.totalorder %s20, 0
      %p61 = por %p59, %p60
      %p62 = scmp.ne.s32.totalorder %s54, %s56
      %p63 = scmp.eq.s32.totalorder %s25, 1
      %p64 = por %p62, %p63
      %p65 = scmp.ne.s32.totalorder %s56, %s57
      %p66 = scmp.eq.s32.totalorder %s25, 0
      %p67 = por %p65, %p66
      %p68 = scmp.ne.s32.totalorder %s56, %s57
      %p69 = scmp.eq.s32.totalorder %s26, 1
      %p70 = por %p68, %p69
      %p72 = scmp.ne.s32.totalorder %s57, %s71
      %p73 = scmp.eq.s32.totalorder %s26, 0
      %p74 = por %p72, %p73
      %s76 = sadd.s32 %s75, 1
      %p79 = scmp.eq.s32.totalorder %s20, 1
      %p80 = scmp.ne.s32.totalorder %s75, %s77
      %p81 = scmp.eq.s32.totalorder %s20, 0
      %p82 = por %p80, %p81
      %p83 = scmp.ne.s32.totalorder %s75, %s77
      %p84 = scmp.eq.s32.totalorder %s25, 1
      %p85 = por %p83, %p84
      %p86 = scmp.ne.s32.totalorder %s77, %s78
      %p87 = scmp.eq.s32.totalorder %s25, 0
      %p88 = por %p86, %p87
      %p89 = scmp.ne.s32.totalorder %s77, %s78
      %p90 = scmp.eq.s32.totalorder %s26, 1
      %p91 = por %p89, %p90
      %p93 = scmp.ne.s32.totalorder %s78, %s92
      %p94 = scmp.eq.s32.totalorder %s26, 0
      %p95 = por %p93, %p94
      %s97 = sadd.s32 %s96, 1
      %p100 = scmp.eq.s32.totalorder %s20, 1
      %p101 = scmp.ne.s32.totalorder %s96, %s98
      %p102 = scmp.eq.s32.totalorder %s20, 0
      %p103 = por %p101, %p102
      %p104 = scmp.ne.s32.totalorder %s96, %s98
      %p105 = scmp.eq.s32.totalorder %s25, 1
      %p106 = por %p104, %p105
      %p107 = scmp.ne.s32.totalorder %s98, %s99
      %p108 = scmp.eq.s32.totalorder %s25, 0
      %p109 = por %p107, %p108
      %p110 = scmp.ne.s32.totalorder %s98, %s99
      %p111 = scmp.eq.s32.totalorder %s26, 1
      %p112 = por %p110, %p111
      %p114 = scmp.ne.s32.totalorder %s99, %s113
      %p115 = scmp.eq.s32.totalorder %s26, 0
      %p116 = por %p114, %p115
      %s118 = sadd.s32 %s117, 1
      %p121 = scmp.eq.s32.totalorder %s20, 1
      %p122 = scmp.ne.s32.totalorder %s117, %s119
      %p123 = scmp.eq.s32.totalorder %s20, 0
      %p124 = por %p122, %p123
      %p125 = scmp.ne.s32.totalorder %s117, %s119
      %p126 = scmp.eq.s32.totalorder %s25, 1
      %p127 = por %p125, %p126
      %p128 = scmp.ne.s32.totalorder %s119, %s120
      %p129 = scmp.eq.s32.totalorder %s25, 0
      %p130 = por %p128, %p129
      %p131 = scmp.ne.s32.totalorder %s119, %s120
      %p132 = scmp.eq.s32.totalorder %s26, 1
      %p133 = por %p131, %p132
      %p135 = scmp.ne.s32.totalorder %s120, %s134
      %p136 = scmp.eq.s32.totalorder %s26, 0
      %p137 = por %p135, %p136
      %s139 = sadd.s32 %s138, 1
      %p142 = scmp.eq.s32.totalorder %s20, 1
      %p143 = scmp.ne.s32.totalorder %s138, %s140
      %p144 = scmp.eq.s32.totalorder %s20, 0
      %p145 = por %p143, %p144
      %p146 = scmp.ne.s32.totalorder %s138, %s140
      %p147 = scmp.eq.s32.totalorder %s25, 1
      %p148 = por %p146, %p147
      %p149 = scmp.ne.s32.totalorder %s140, %s141
      %p150 = scmp.eq.s32.totalorder %s25, 0
      %p151 = por %p149, %p150
      %p152 = scmp.ne.s32.totalorder %s140, %s141
      %p153 = scmp.eq.s32.totalorder %s26, 1
      %p154 = por %p152, %p153
      %p156 = scmp.ne.s32.totalorder %s141, %s155
      %p157 = scmp.eq.s32.totalorder %s26, 0
      %p158 = por %p156, %p157
      %s159 = ssub.s32 %s20, %s27
      %p160 = scmp.eq.s32.totalorder %s159, 0
      %s162 = sadd.s32 %s161, 1
      %s163 = scalar_select %p160, %s161, %s162
      %p166 = pneg %p160
      %p167 = scmp.eq.s32.totalorder %s20, 1
      %p168 = por %p166, %p167
      %p169 = scmp.ne.s32.totalorder %s161, %s164
      %p170 = scmp.eq.s32.totalorder %s20, 0
      %p171 = por %p169, %p170
      %p172 = scmp.ne.s32.totalorder %s161, %s164
      %p173 = scmp.eq.s32.totalorder %s25, 1
      %p174 = por %p172, %p173
      %p175 = scmp.ne.s32.totalorder %s164, %s165
      %p176 = scmp.eq.s32.totalorder %s25, 0
      %p177 = por %p175, %p176
      %p178 = scmp.ne.s32.totalorder %s164, %s165
      %p179 = scmp.eq.s32.totalorder %s26, 1
      %p180 = por %p178, %p179
      %p182 = scmp.ne.s32.totalorder %s165, %s181
      %p183 = scmp.eq.s32.totalorder %s26, 0
      %p184 = por %p182, %p183
      %p185 = scmp.le.s32.totalorder 1, %s20
      %p186 = scmp.lt.s32.totalorder %s20, 3
      %p187 = pnand %p185, %p186
      %p188 = pneg %p187
      // Predicated region
      $region9: #{tpu_custom_call.1} parent=5 // pred_check
        _
      $region10: #{tpu_custom_call.1} parent=5 // pred_check_branch
        %190 = sbr.rel (%p187) target = $region12
      $region11: #{tpu_custom_call.1} parent=5 // pred_region
        %s191 = ssub.s32 %s20, 1
        // Predicated region
        $region13: #{tpu_custom_call.1} parent=11 // pred_check
          %p192 = pneg %p67
        $region14: #{tpu_custom_call.1} parent=11 // pred_check_branch
          %194 = sbr.rel (%p192) target = $region16
        $region15: #{tpu_custom_call.1} parent=11 // pred_region
          %s196 = ssub.s32 128, 128
          %197 = vsyncadd [#allocation6], %s196
          %s199 = sshll.u32 [#allocation5], 4
          %s200 = int_to_ptr.vmem [resolvable:$true] %s199
          %202 = dma.hbm_to_vmem [thread:$0]  %s1, 128, %s200, [#allocation6]
        $region16: #{tpu_custom_call.1} parent=11 // pred_fallthru
          _
        // Predicated region
        $region17: #{tpu_custom_call.1} parent=11 // pred_check
          %p203 = pneg %p88
        $region18: #{tpu_custom_call.1} parent=11 // pred_check_branch
          %205 = sbr.rel (%p203) target = $region20
        $region19: #{tpu_custom_call.1} parent=11 // pred_region
          %s207 = ssub.s32 256, 256
          %208 = vsyncadd [#allocation6], %s207
          %s209 = sshll.u32 [#allocation7], 4
          %s210 = int_to_ptr.vmem [resolvable:$true] %s209
          %215 = dma.hbm_to_vmem [thread:$0]  %s2, 256, %s210, [#allocation6], 64, 64, 4
        $region20: #{tpu_custom_call.1} parent=11 // pred_fallthru
          _
        // Predicated region
        $region21: #{tpu_custom_call.1} parent=11 // pred_check
          %p216 = pneg %p109
        $region22: #{tpu_custom_call.1} parent=11 // pred_check_branch
          %218 = sbr.rel (%p216) target = $region24
        $region23: #{tpu_custom_call.1} parent=11 // pred_region
          _
        $region24: #{tpu_custom_call.1} parent=11 // pred_fallthru
          _
        // Predicated region
        $region25: #{tpu_custom_call.1} parent=11 // pred_check
          %p219 = pneg %p130
        $region26: #{tpu_custom_call.1} parent=11 // pred_check_branch
          %221 = sbr.rel (%p219) target = $region28
        $region27: #{tpu_custom_call.1} parent=11 // pred_region
          %s223 = ssub.s32 256, 256
          %224 = vsyncadd [#allocation9], %s223
          %s225 = sshll.u32 [#allocation8], 4
          %s226 = int_to_ptr.vmem [resolvable:$true] %s225
          %231 = dma.hbm_to_vmem [thread:$0]  %s4, 256, %s226, [#allocation9], 64, 64, 4
        $region28: #{tpu_custom_call.1} parent=11 // pred_fallthru
          _
        // Predicated region
        $region29: #{tpu_custom_call.1} parent=11 // pred_check
          %p232 = pneg %p151
        $region30: #{tpu_custom_call.1} parent=11 // pred_check_branch
          %234 = sbr.rel (%p232) target = $region32
        $region31: #{tpu_custom_call.1} parent=11 // pred_region
          _
        $region32: #{tpu_custom_call.1} parent=11 // pred_fallthru
          _
      $region12: #{tpu_custom_call.1} parent=5 // pred_fallthru
        _
      %p235 = scmp.lt.s32.totalorder %s20, 2
      // Predicated region
      $region33: #{tpu_custom_call.1} parent=5 // pred_check
        %p236 = pneg %p235
      $region34: #{tpu_custom_call.1} parent=5 // pred_check_branch
        %238 = sbr.rel (%p236) target = $region36
      $region35: #{tpu_custom_call.1} parent=5 // pred_region
        // Predicated region
        $region37: #{tpu_custom_call.1} parent=35 // pred_check
          %p239 = pneg %p40
        $region38: #{tpu_custom_call.1} parent=35 // pred_check_branch
          %241 = sbr.rel (%p239) target = $region40
        $region39: #{tpu_custom_call.1} parent=35 // pred_region
          %s242 = sand.u32 %s30, 1
          %s243 = scalar_lea.sflag [#allocation3], %s242
          %s244 = sand.u32 %s30, 1
          %s245 = smul.addr %s244, 8
          %s246 = scalar_lea.vmem [#allocation2], %s245
          %s248 = ssub.s32 128, 128
          %249 = vsyncadd %s243, %s248
          %s250 = smul.addr %s20, 128
          %s251 = scalar_lea.hbm %s0, %s250
          %s253 = sshll.u32 %s246, 4
          %s254 = int_to_ptr.vmem [resolvable:$true] %s253
          %256 = dma.hbm_to_vmem [thread:$0]  %s251, 128, %s254, %s243
        $region40: #{tpu_custom_call.1} parent=35 // pred_fallthru
          _
      $region36: #{tpu_custom_call.1} parent=5 // pred_fallthru
        _
      %p257 = scmp.le.s32.totalorder 1, %s20
      %p258 = scmp.lt.s32.totalorder %s20, 3
      %p259 = pnand %p257, %p258
      %p260 = pneg %p259
      // Predicated region
      $region41: #{tpu_custom_call.1} parent=5 // pred_check
        _
      $region42: #{tpu_custom_call.1} parent=5 // pred_check_branch
        %262 = sbr.rel (%p259) target = $region44
      $region43: #{tpu_custom_call.1} parent=5 // pred_region
        %s263 = ssub.s32 %s20, 1
        %s264 = sand.u32 %s33, 1
        %s265 = scalar_lea.sflag [#allocation3], %s264
        %s266 = sand.u32 %s33, 1
        %s267 = smul.addr %s266, 8
        %s268 = scalar_lea.vmem [#allocation2], %s267
        // Predicated region
        $region45: #{tpu_custom_call.1} parent=43 // pred_check
          %p269 = pneg %p46
        $region46: #{tpu_custom_call.1} parent=43 // pred_check_branch
          %271 = sbr.rel (%p269) target = $region48
        $region47: #{tpu_custom_call.1} parent=43 // pred_region
          %272 = dma.done %s265, 128
        $region48: #{tpu_custom_call.1} parent=43 // pred_fallthru
          _
        // Predicated region
        $region49: #{tpu_custom_call.1} parent=43 // pred_check
          %p273 = pneg %p67
        $region50: #{tpu_custom_call.1} parent=43 // pred_check_branch
          %275 = sbr.rel (%p273) target = $region52
        $region51: #{tpu_custom_call.1} parent=43 // pred_region
          %276 = dma.done [#allocation6], 128
        $region52: #{tpu_custom_call.1} parent=43 // pred_fallthru
          _
        // Predicated region
        $region53: #{tpu_custom_call.1} parent=43 // pred_check
          %p277 = pneg %p88
        $region54: #{tpu_custom_call.1} parent=43 // pred_check_branch
          %279 = sbr.rel (%p277) target = $region56
        $region55: #{tpu_custom_call.1} parent=43 // pred_region
          %280 = dma.done [#allocation6], 256
        $region56: #{tpu_custom_call.1} parent=43 // pred_fallthru
          _
        // Predicated region
        $region57: #{tpu_custom_call.1} parent=43 // pred_check
          %p281 = pneg %p130
        $region58: #{tpu_custom_call.1} parent=43 // pred_check_branch
          %283 = sbr.rel (%p281) target = $region60
        $region59: #{tpu_custom_call.1} parent=43 // pred_region
          %284 = dma.done [#allocation9], 256
        $region60: #{tpu_custom_call.1} parent=43 // pred_fallthru
          _
        %s285 = sand.u32 %s33, 1
        %s286 = scalar_lea.sflag [#allocation3], %s285
        %s287 = sand.u32 %s33, 1
        %s288 = smul.addr %s287, 8
        %s289 = scalar_lea.vmem [#allocation2], %s288
        %p290 = pneg %p46
        %p291 = pneg %p43
        %p292 = pneg %p67
        %p293 = pneg %p64
        %p294 = pneg %p88
        %p295 = pneg %p85
        %p296 = pneg %p109
        %p297 = pneg %p106
        %p298 = pneg %p130
        %p299 = pneg %p127
        %p300 = pneg %p151
        %p301 = pneg %p148
        %p302 = pneg %p177
        %p303 = pneg %p174
        %s304 = sand.u32 %s164, 1
        %s305 = scalar_lea.sflag [#allocation4], %s304
        %s306 = sand.u32 %s164, 1
        %s307 = smul.addr %s306, 8
        %s308 = scalar_lea.vmem [#allocation10], %s307
        %v310 = vld [vmem:[%s268] sm:$0xff]
        %vm311 = vcmask 261120
        %v312 = vsel %vm311, %v310, 0.0
        %313 = vadd.xlane.f32.xlu0 %v312
        %v314 = vpop.xlane.xlu0 %313
        %v315 = vrcp.pop 32.0
        %v316 = vmul.f32 %v314, %v315
        %v317 = vsub.f32 %v310, %v316
        %v318 = vmul.f32 %v317, %v317
        %v319 = vsel %vm311, %v318, 0.0
        %320 = vadd.xlane.f32.xlu0 %v319
        %v321 = vpop.xlane.xlu0 %320
        %v322 = vrcp.pop 31.0
        %v323 = vmul.f32 %v321, %v322
        %v324 = vrsqrt.pop %v323
        %v325 = vmul.f32 %v323, %v324
        %vm326 = vcmp.eq.f32.partialorder %v323, inf
        %v327 = vsel %vm326, %v323, %v325
        %vm328 = vcmp.eq.f32.partialorder %v323, 0.0
        %v329 = vand.u32 %v323, 2147483648
        %v330 = vsel %vm328, %v329, %v327
        %v331 = vadd.f32 %v330, 1e-06
        %v332 = vrcp.pop %v331
        %v333 = vmul.f32 %v317, %v332
        %v334 = vadd.f32 %v333, 0.0
        %v335 = vpack.c.bf16 %v334, %v334
        %v336 = vld [vmem:[#allocation7] sm:$0xf]
        %v337 = vld [vmem:[#allocation7 + $0x4] sm:$0xf]
        %v338 = vld [vmem:[#allocation7 + $0x8] sm:$0xf]
        %v339 = vld [vmem:[#allocation7 + $0xc] sm:$0xf]
        %v340 = vld [vmem:[%s3] sm:$0x1]
        %v342 = vlaneseq
        %v343 = vshrl.u32 %v342, 7
        %v344 = vsub.s32 0, %v343
        %v345 = vrot.slane %v340, %v344
        %v351 = vunpack.c.l.b16 %v336
        %v352 = vunpack.c.l.b16 %v337
        %v353 = vunpack.c.l.b16 %v338
        %v354 = vunpack.c.l.b16 %v339
        %v355 = vpack.c.b16 %v352, %v351
        %v356 = vpack.c.b16 %v354, %v353
        %v360 = vsel %vm311, %v335, 0
        %362 = vmatprep.subr.bf16.mxu0 0
        %363 = vmatpush1.bf16.msra.mxu0 %v355
        %364 = vmatprep.subr.bf16.mxu0 0
        %365 = vmatpush1.bf16.msra.mxu0 %v356
        %366 = vmatprep.subr.bf16.mxu0 0
        %367 = vmatpush1.bf16.msra.mxu0 0
        %368 = vmatprep.subr.bf16.mxu0 0
        %369 = vmatpush1.bf16.msra.mxu0 0
        %370 = vmatprep.subr.bf16.mxu0 0
        %371 = vmatpush1.bf16.msra.mxu0 0
        %372 = vmatprep.subr.bf16.mxu0 0
        %373 = vmatpush1.bf16.msra.mxu0 0
        %374 = vmatprep.subr.bf16.mxu0 0
        %375 = vmatpush1.bf16.msra.mxu0 0
        %376 = vmatprep.subr.bf16.mxu0 0
        %377 = vmatpush1.bf16.msra.mxu0 0
        %378 = vmatprep.subr.bf16.mxu0 0
        %379 = vmatpush1.bf16.msra.mxu0 0
        %380 = vmatprep.subr.bf16.mxu0 0
        %381 = vmatpush1.bf16.msra.mxu0 0
        %382 = vmatprep.subr.bf16.mxu0 0
        %383 = vmatpush1.bf16.msra.mxu0 0
        %384 = vmatprep.subr.bf16.mxu0 0
        %385 = vmatpush1.bf16.msra.mxu0 0
        %386 = vmatprep.subr.bf16.mxu0 0
        %387 = vmatpush1.bf16.msra.mxu0 0
        %388 = vmatprep.subr.bf16.mxu0 0
        %389 = vmatpush1.bf16.msra.mxu0 0
        %390 = vmatprep.subr.bf16.mxu0 0
        %391 = vmatpush1.bf16.msra.mxu0 0
        %392 = vmatprep.subr.bf16.mxu0 0
        %393 = vmatpush1.bf16.msra.mxu0 0
        %394 = vmatprep.mubr.bf16.mxu0 0
        %395 = vmatmul.mubr.bf16.gmra.mrb[0].mxu0 %v360
        %v396 = vpop.f32.mrb[0].mxu0
        %v397 = vadd.f32 %v345, %v396
        %v398 = vpop.f32.mrb[0].mxu0
        %v399 = vpop.f32.mrb[0].mxu0
        %v400 = vpop.f32.mrb[0].mxu0
        %401 = vdwg.mxu0
        %v402 = vld [vmem:[#allocation5] sm:$0xff]
        %v403 = vld [vmem:[#allocation8] sm:$0xf]
        %v404 = vld [vmem:[#allocation8 + $0x4] sm:$0xf]
        %v405 = vld [vmem:[#allocation8 + $0x8] sm:$0xf]
        %v406 = vld [vmem:[#allocation8 + $0xc] sm:$0xf]
        %vm407 = vcmp.ne.f32.partialorder %v402, 0.0
        %v408 = vpack.c.bf16 %v397, %v397
        %410 = vrot.lane.b32.xlu0 %v408, 96
        %v411 = vpop.permute.xlu0 %410
        %vm412 = vcmask 64512
        %v414 = vsel %vm412, %v408, 0
        %v417 = vsel %vm412, %v411, 0
        %419 = vmatprep.subr.bf16.mxu0 0
        %420 = vmatpush1.bf16.xpose.msra.mxu0 %v417
        %421 = vmatprep.subr.bf16.mxu0 0
        %422 = vmatpush1.bf16.xpose.msra.mxu0 0
        %423 = vmatprep.subr.bf16.mxu0 0
        %424 = vmatpush1.bf16.xpose.msra.mxu0 0
        %425 = vmatprep.subr.bf16.mxu0 0
        %426 = vmatpush1.bf16.xpose.msra.mxu0 0
        %427 = vmatprep.subr.bf16.mxu0 0
        %428 = vmatpush1.bf16.xpose.msra.mxu0 0
        %429 = vmatprep.subr.bf16.mxu0 0
        %430 = vmatpush1.bf16.xpose.msra.mxu0 0
        %431 = vmatprep.subr.bf16.mxu0 0
        %432 = vmatpush1.bf16.xpose.msra.mxu0 0
        %433 = vmatprep.subr.bf16.mxu0 0
        %434 = vmatpush1.bf16.xpose.msra.mxu0 0
        %435 = vmatprep.subr.bf16.mxu0 0
        %436 = vmatpush1.bf16.xpose.msra.mxu0 0
        %437 = vmatprep.subr.bf16.mxu0 0
        %438 = vmatpush1.bf16.xpose.msra.mxu0 0
        %439 = vmatprep.subr.bf16.mxu0 0
        %440 = vmatpush1.bf16.xpose.msra.mxu0 0
        %441 = vmatprep.subr.bf16.mxu0 0
        %442 = vmatpush1.bf16.xpose.msra.mxu0 0
        %443 = vmatprep.subr.bf16.mxu0 0
        %444 = vmatpush1.bf16.xpose.msra.mxu0 0
        %445 = vmatprep.subr.bf16.mxu0 0
        %446 = vmatpush1.bf16.xpose.msra.mxu0 0
        %447 = vmatprep.subr.bf16.mxu0 0
        %448 = vmatpush1.bf16.xpose.msra.mxu0 0
        %449 = vmatprep.subr.bf16.mxu0 0
        %450 = vmatpush1.bf16.xpose.msra.mxu0 0
        %451 = vmatprep.mubr.bf16.mxu0 0
        %452 = vmatmul.mubr.bf16.gmra.mrb[0].mxu0 %v414
        %v453 = vpop.f32.mrb[0].mxu0
        %v454 = vadd.f32 0.0, %v453
        %v455 = vpop.f32.mrb[0].mxu0
        %v456 = vpop.f32.mrb[0].mxu0
        %v457 = vpop.f32.mrb[0].mxu0
        %458 = vdwg.mxu0
        %v459 = vmul.f32 %v454, 0.35355338
        %v460 = vsel %vm407, %v459, -1e+09
        %v461 = vsel %vm412, %v460, -inf
        %462 = vmax.xlane.f32.xlu0 %v461
        %v463 = vpop.xlane.xlu0 %462
        %v464 = vsub.f32 %v460, %v463
        %v465 = vmul.f32 %v464, 1.442695
        %v466 = vpow.pop %v465
        %v467 = vsel %vm412, %v466, 0.0
        %468 = vadd.xlane.f32.xlu0 %v467
        %v469 = vpop.xlane.xlu0 %468
        %v470 = vrcp.pop %v469
        %v471 = vmul.f32 %v466, %v470
        %v472 = vpack.c.bf16 %v471, %v471
        %473 = vrot.lane.b32.xlu0 %v408, 64
        %v474 = vpop.permute.xlu0 %473
        %v476 = vsel %vm412, %v472, 0
        %vm478 = vcmask 1043456
        %v480 = vsel %vm478, %v474, 0
        %482 = vmatprep.subr.bf16.mxu0 0
        %483 = vmatpush1.bf16.msra.mxu0 %v480
        %484 = vmatprep.subr.bf16.mxu0 0
        %485 = vmatpush1.bf16.msra.mxu0 0
        %486 = vmatprep.subr.bf16.mxu0 0
        %487 = vmatpush1.bf16.msra.mxu0 0
        %488 = vmatprep.subr.bf16.mxu0 0
        %489 = vmatpush1.bf16.msra.mxu0 0
        %490 = vmatprep.subr.bf16.mxu0 0
        %491 = vmatpush1.bf16.msra.mxu0 0
        %492 = vmatprep.subr.bf16.mxu0 0
        %493 = vmatpush1.bf16.msra.mxu0 0
        %494 = vmatprep.subr.bf16.mxu0 0
        %495 = vmatpush1.bf16.msra.mxu0 0
        %496 = vmatprep.subr.bf16.mxu0 0
        %497 = vmatpush1.bf16.msra.mxu0 0
        %498 = vmatprep.subr.bf16.mxu0 0
        %499 = vmatpush1.bf16.msra.mxu0 0
        %500 = vmatprep.subr.bf16.mxu0 0
        %501 = vmatpush1.bf16.msra.mxu0 0
        %502 = vmatprep.subr.bf16.mxu0 0
        %503 = vmatpush1.bf16.msra.mxu0 0
        %504 = vmatprep.subr.bf16.mxu0 0
        %505 = vmatpush1.bf16.msra.mxu0 0
        %506 = vmatprep.subr.bf16.mxu0 0
        %507 = vmatpush1.bf16.msra.mxu0 0
        %508 = vmatprep.subr.bf16.mxu0 0
        %509 = vmatpush1.bf16.msra.mxu0 0
        %510 = vmatprep.subr.bf16.mxu0 0
        %511 = vmatpush1.bf16.msra.mxu0 0
        %512 = vmatprep.subr.bf16.mxu0 0
        %513 = vmatpush1.bf16.msra.mxu0 0
        %514 = vmatprep.mubr.bf16.mxu0 0
        %515 = vmatmul.mubr.bf16.gmra.mrb[0].mxu0 %v476
        %v516 = vpop.f32.mrb[0].mxu0
        %v517 = vadd.f32 0.0, %v516
        %v518 = vpop.f32.mrb[0].mxu0
        %v519 = vpop.f32.mrb[0].mxu0
        %v520 = vpop.f32.mrb[0].mxu0
        %521 = vdwg.mxu0
        %v522 = vpack.c.bf16 %v517, %v517
        %523 = vrot.lane.b32.xlu0 %v408, 120
        %v524 = vpop.permute.xlu0 %523
        %525 = vrot.lane.b32.xlu0 %v408, 88
        %v526 = vpop.permute.xlu0 %525
        %v528 = vsel %vm412, %v524, 0
        %v531 = vsel %vm412, %v526, 0
        %533 = vmatprep.subr.bf16.mxu0 0
        %534 = vmatpush1.bf16.xpose.msra.mxu0 %v531
        %535 = vmatprep.subr.bf16.mxu0 0
        %536 = vmatpush1.bf16.xpose.msra.mxu0 0
        %537 = vmatprep.subr.bf16.mxu0 0
        %538 = vmatpush1.bf16.xpose.msra.mxu0 0
        %539 = vmatprep.subr.bf16.mxu0 0
        %540 = vmatpush1.bf16.xpose.msra.mxu0 0
        %541 = vmatprep.subr.bf16.mxu0 0
        %542 = vmatpush1.bf16.xpose.msra.mxu0 0
        %543 = vmatprep.subr.bf16.mxu0 0
        %544 = vmatpush1.bf16.xpose.msra.mxu0 0
        %545 = vmatprep.subr.bf16.mxu0 0
        %546 = vmatpush1.bf16.xpose.msra.mxu0 0
        %547 = vmatprep.subr.bf16.mxu0 0
        %548 = vmatpush1.bf16.xpose.msra.mxu0 0
        %549 = vmatprep.subr.bf16.mxu0 0
        %550 = vmatpush1.bf16.xpose.msra.mxu0 0
        %551 = vmatprep.subr.bf16.mxu0 0
        %552 = vmatpush1.bf16.xpose.msra.mxu0 0
        %553 = vmatprep.subr.bf16.mxu0 0
        %554 = vmatpush1.bf16.xpose.msra.mxu0 0
        %555 = vmatprep.subr.bf16.mxu0 0
        %556 = vmatpush1.bf16.xpose.msra.mxu0 0
        %557 = vmatprep.subr.bf16.mxu0 0
        %558 = vmatpush1.bf16.xpose.msra.mxu0 0
        %559 = vmatprep.subr.bf16.mxu0 0
        %560 = vmatpush1.bf16.xpose.msra.mxu0 0
        %561 = vmatprep.subr.bf16.mxu0 0
        %562 = vmatpush1.bf16.xpose.msra.mxu0 0
        %563 = vmatprep.subr.bf16.mxu0 0
        %564 = vmatpush1.bf16.xpose.msra.mxu0 0
        %565 = vmatprep.mubr.bf16.mxu0 0
        %566 = vmatmul.mubr.bf16.gmra.mrb[0].mxu0 %v528
        %v567 = vpop.f32.mrb[0].mxu0
        %v568 = vadd.f32 0.0, %v567
        %v569 = vpop.f32.mrb[0].mxu0
        %v570 = vpop.f32.mrb[0].mxu0
        %v571 = vpop.f32.mrb[0].mxu0
        %572 = vdwg.mxu0
        %v573 = vmul.f32 %v568, 0.35355338
        %v574 = vsel %vm407, %v573, -1e+09
        %v575 = vsel %vm412, %v574, -inf
        %576 = vmax.xlane.f32.xlu0 %v575
        %v577 = vpop.xlane.xlu0 %576
        %v578 = vsub.f32 %v574, %v577
        %v579 = vmul.f32 %v578, 1.442695
        %v580 = vpow.pop %v579
        %v581 = vsel %vm412, %v580, 0.0
        %582 = vadd.xlane.f32.xlu0 %v581
        %v583 = vpop.xlane.xlu0 %582
        %v584 = vrcp.pop %v583
        %v585 = vmul.f32 %v580, %v584
        %v586 = vpack.c.bf16 %v585, %v585
        %587 = vrot.lane.b32.xlu0 %v408, 56
        %v588 = vpop.permute.xlu0 %587
        %v590 = vsel %vm412, %v586, 0
        %v593 = vsel %vm478, %v588, 0
        %595 = vmatprep.subr.bf16.mxu0 0
        %596 = vmatpush1.bf16.msra.mxu0 %v593
        %597 = vmatprep.subr.bf16.mxu0 0
        %598 = vmatpush1.bf16.msra.mxu0 0
        %599 = vmatprep.subr.bf16.mxu0 0
        %600 = vmatpush1.bf16.msra.mxu0 0
        %601 = vmatprep.subr.bf16.mxu0 0
        %602 = vmatpush1.bf16.msra.mxu0 0
        %603 = vmatprep.subr.bf16.mxu0 0
        %604 = vmatpush1.bf16.msra.mxu0 0
        %605 = vmatprep.subr.bf16.mxu0 0
        %606 = vmatpush1.bf16.msra.mxu0 0
        %607 = vmatprep.subr.bf16.mxu0 0
        %608 = vmatpush1.bf16.msra.mxu0 0
        %609 = vmatprep.subr.bf16.mxu0 0
        %610 = vmatpush1.bf16.msra.mxu0 0
        %611 = vmatprep.subr.bf16.mxu0 0
        %612 = vmatpush1.bf16.msra.mxu0 0
        %613 = vmatprep.subr.bf16.mxu0 0
        %614 = vmatpush1.bf16.msra.mxu0 0
        %615 = vmatprep.subr.bf16.mxu0 0
        %616 = vmatpush1.bf16.msra.mxu0 0
        %617 = vmatprep.subr.bf16.mxu0 0
        %618 = vmatpush1.bf16.msra.mxu0 0
        %619 = vmatprep.subr.bf16.mxu0 0
        %620 = vmatpush1.bf16.msra.mxu0 0
        %621 = vmatprep.subr.bf16.mxu0 0
        %622 = vmatpush1.bf16.msra.mxu0 0
        %623 = vmatprep.subr.bf16.mxu0 0
        %624 = vmatpush1.bf16.msra.mxu0 0
        %625 = vmatprep.subr.bf16.mxu0 0
        %626 = vmatpush1.bf16.msra.mxu0 0
        %627 = vmatprep.mubr.bf16.mxu0 0
        %628 = vmatmul.mubr.bf16.gmra.mrb[0].mxu0 %v590
        %v629 = vpop.f32.mrb[0].mxu0
        %v630 = vadd.f32 0.0, %v629
        %v631 = vpop.f32.mrb[0].mxu0
        %v632 = vpop.f32.mrb[0].mxu0
        %v633 = vpop.f32.mrb[0].mxu0
        %634 = vdwg.mxu0
        %v635 = vpack.c.bf16 %v630, %v630
        %v637 = vsel %vm412, %v635, 0
        %v640 = vsel %vm478, %v404, 0
        %642 = vmatprep.subr.bf16.mxu0 0
        %643 = vmatpush1.bf16.msra.mxu0 %v640
        %644 = vmatprep.subr.bf16.mxu0 0
        %645 = vmatpush1.bf16.msra.mxu0 0
        %646 = vmatprep.subr.bf16.mxu0 0
        %647 = vmatpush1.bf16.msra.mxu0 0
        %648 = vmatprep.subr.bf16.mxu0 0
        %649 = vmatpush1.bf16.msra.mxu0 0
        %650 = vmatprep.subr.bf16.mxu0 0
        %651 = vmatpush1.bf16.msra.mxu0 0
        %652 = vmatprep.subr.bf16.mxu0 0
        %653 = vmatpush1.bf16.msra.mxu0 0
        %654 = vmatprep.subr.bf16.mxu0 0
        %655 = vmatpush1.bf16.msra.mxu0 0
        %656 = vmatprep.subr.bf16.mxu0 0
        %657 = vmatpush1.bf16.msra.mxu0 0
        %658 = vmatprep.subr.bf16.mxu0 0
        %659 = vmatpush1.bf16.msra.mxu0 0
        %660 = vmatprep.subr.bf16.mxu0 0
        %661 = vmatpush1.bf16.msra.mxu0 0
        %662 = vmatprep.subr.bf16.mxu0 0
        %663 = vmatpush1.bf16.msra.mxu0 0
        %664 = vmatprep.subr.bf16.mxu0 0
        %665 = vmatpush1.bf16.msra.mxu0 0
        %666 = vmatprep.subr.bf16.mxu0 0
        %667 = vmatpush1.bf16.msra.mxu0 0
        %668 = vmatprep.subr.bf16.mxu0 0
        %669 = vmatpush1.bf16.msra.mxu0 0
        %670 = vmatprep.subr.bf16.mxu0 0
        %671 = vmatpush1.bf16.msra.mxu0 0
        %672 = vmatprep.subr.bf16.mxu0 0
        %673 = vmatpush1.bf16.msra.mxu0 0
        %674 = vmatprep.mubr.bf16.mxu0 0
        %675 = vmatmul.mubr.bf16.gmra.mrb[0].mxu0 %v637
        %v676 = vpop.f32.mrb[0].mxu0
        %v677 = vadd.f32 0.0, %v676
        %v678 = vpop.f32.mrb[0].mxu0
        %v679 = vpop.f32.mrb[0].mxu0
        %v680 = vpop.f32.mrb[0].mxu0
        %681 = vdwg.mxu0
        %v683 = vsel %vm412, %v522, 0
        %v686 = vsel %vm478, %v403, 0
        %688 = vmatprep.subr.bf16.mxu0 0
        %689 = vmatpush1.bf16.msra.mxu0 %v686
        %690 = vmatprep.subr.bf16.mxu0 0
        %691 = vmatpush1.bf16.msra.mxu0 0
        %692 = vmatprep.subr.bf16.mxu0 0
        %693 = vmatpush1.bf16.msra.mxu0 0
        %694 = vmatprep.subr.bf16.mxu0 0
        %695 = vmatpush1.bf16.msra.mxu0 0
        %696 = vmatprep.subr.bf16.mxu0 0
        %697 = vmatpush1.bf16.msra.mxu0 0
        %698 = vmatprep.subr.bf16.mxu0 0
        %699 = vmatpush1.bf16.msra.mxu0 0
        %700 = vmatprep.subr.bf16.mxu0 0
        %701 = vmatpush1.bf16.msra.mxu0 0
        %702 = vmatprep.subr.bf16.mxu0 0
        %703 = vmatpush1.bf16.msra.mxu0 0
        %704 = vmatprep.subr.bf16.mxu0 0
        %705 = vmatpush1.bf16.msra.mxu0 0
        %706 = vmatprep.subr.bf16.mxu0 0
        %707 = vmatpush1.bf16.msra.mxu0 0
        %708 = vmatprep.subr.bf16.mxu0 0
        %709 = vmatpush1.bf16.msra.mxu0 0
        %710 = vmatprep.subr.bf16.mxu0 0
        %711 = vmatpush1.bf16.msra.mxu0 0
        %712 = vmatprep.subr.bf16.mxu0 0
        %713 = vmatpush1.bf16.msra.mxu0 0
        %714 = vmatprep.subr.bf16.mxu0 0
        %715 = vmatpush1.bf16.msra.mxu0 0
        %716 = vmatprep.subr.bf16.mxu0 0
        %717 = vmatpush1.bf16.msra.mxu0 0
        %718 = vmatprep.subr.bf16.mxu0 0
        %719 = vmatpush1.bf16.msra.mxu0 0
        %720 = vmatprep.mubr.bf16.mxu0 0
        %721 = vmatmul.mubr.bf16.gmra.mrb[0].mxu0 %v683
        %v722 = vpop.f32.mrb[0].mxu0
        %v723 = vadd.f32 %v677, %v722
        %v724 = vpop.f32.mrb[0].mxu0
        %v725 = vpop.f32.mrb[0].mxu0
        %v726 = vpop.f32.mrb[0].mxu0
        %727 = vdwg.mxu0
        %728 = vrot.lane.b32.xlu0 %v408, 112
        %v729 = vpop.permute.xlu0 %728
        %730 = vrot.lane.b32.xlu0 %v408, 80
        %v731 = vpop.permute.xlu0 %730
        %v733 = vsel %vm412, %v729, 0
        %v736 = vsel %vm412, %v731, 0
        %738 = vmatprep.subr.bf16.mxu0 0
        %739 = vmatpush1.bf16.xpose.msra.mxu0 %v736
        %740 = vmatprep.subr.bf16.mxu0 0
        %741 = vmatpush1.bf16.xpose.msra.mxu0 0
        %742 = vmatprep.subr.bf16.mxu0 0
        %743 = vmatpush1.bf16.xpose.msra.mxu0 0
        %744 = vmatprep.subr.bf16.mxu0 0
        %745 = vmatpush1.bf16.xpose.msra.mxu0 0
        %746 = vmatprep.subr.bf16.mxu0 0
        %747 = vmatpush1.bf16.xpose.msra.mxu0 0
        %748 = vmatprep.subr.bf16.mxu0 0
        %749 = vmatpush1.bf16.xpose.msra.mxu0 0
        %750 = vmatprep.subr.bf16.mxu0 0
        %751 = vmatpush1.bf16.xpose.msra.mxu0 0
        %752 = vmatprep.subr.bf16.mxu0 0
        %753 = vmatpush1.bf16.xpose.msra.mxu0 0
        %754 = vmatprep.subr.bf16.mxu0 0
        %755 = vmatpush1.bf16.xpose.msra.mxu0 0
        %756 = vmatprep.subr.bf16.mxu0 0
        %757 = vmatpush1.bf16.xpose.msra.mxu0 0
        %758 = vmatprep.subr.bf16.mxu0 0
        %759 = vmatpush1.bf16.xpose.msra.mxu0 0
        %760 = vmatprep.subr.bf16.mxu0 0
        %761 = vmatpush1.bf16.xpose.msra.mxu0 0
        %762 = vmatprep.subr.bf16.mxu0 0
        %763 = vmatpush1.bf16.xpose.msra.mxu0 0
        %764 = vmatprep.subr.bf16.mxu0 0
        %765 = vmatpush1.bf16.xpose.msra.mxu0 0
        %766 = vmatprep.subr.bf16.mxu0 0
        %767 = vmatpush1.bf16.xpose.msra.mxu0 0
        %768 = vmatprep.subr.bf16.mxu0 0
        %769 = vmatpush1.bf16.xpose.msra.mxu0 0
        %770 = vmatprep.mubr.bf16.mxu0 0
        %771 = vmatmul.mubr.bf16.gmra.mrb[0].mxu0 %v733
        %v772 = vpop.f32.mrb[0].mxu0
        %v773 = vadd.f32 0.0, %v772
        %v774 = vpop.f32.mrb[0].mxu0
        %v775 = vpop.f32.mrb[0].mxu0
        %v776 = vpop.f32.mrb[0].mxu0
        %777 = vdwg.mxu0
        %v778 = vmul.f32 %v773, 0.35355338
        %v779 = vsel %vm407, %v778, -1e+09
        %v780 = vsel %vm412, %v779, -inf
        %781 = vmax.xlane.f32.xlu0 %v780
        %v782 = vpop.xlane.xlu0 %781
        %v783 = vsub.f32 %v779, %v782
        %v784 = vmul.f32 %v783, 1.442695
        %v785 = vpow.pop %v784
        %v786 = vsel %vm412, %v785, 0.0
        %787 = vadd.xlane.f32.xlu0 %v786
        %v788 = vpop.xlane.xlu0 %787
        %v789 = vrcp.pop %v788
        %v790 = vmul.f32 %v785, %v789
        %v791 = vpack.c.bf16 %v790, %v790
        %792 = vrot.lane.b32.xlu0 %v408, 48
        %v793 = vpop.permute.xlu0 %792
        %v795 = vsel %vm412, %v791, 0
        %v798 = vsel %vm478, %v793, 0
        %800 = vmatprep.subr.bf16.mxu0 0
        %801 = vmatpush1.bf16.msra.mxu0 %v798
        %802 = vmatprep.subr.bf16.mxu0 0
        %803 = vmatpush1.bf16.msra.mxu0 0
        %804 = vmatprep.subr.bf16.mxu0 0
        %805 = vmatpush1.bf16.msra.mxu0 0
        %806 = vmatprep.subr.bf16.mxu0 0
        %807 = vmatpush1.bf16.msra.mxu0 0
        %808 = vmatprep.subr.bf16.mxu0 0
        %809 = vmatpush1.bf16.msra.mxu0 0
        %810 = vmatprep.subr.bf16.mxu0 0
        %811 = vmatpush1.bf16.msra.mxu0 0
        %812 = vmatprep.subr.bf16.mxu0 0
        %813 = vmatpush1.bf16.msra.mxu0 0
        %814 = vmatprep.subr.bf16.mxu0 0
        %815 = vmatpush1.bf16.msra.mxu0 0
        %816 = vmatprep.subr.bf16.mxu0 0
        %817 = vmatpush1.bf16.msra.mxu0 0
        %818 = vmatprep.subr.bf16.mxu0 0
        %819 = vmatpush1.bf16.msra.mxu0 0
        %820 = vmatprep.subr.bf16.mxu0 0
        %821 = vmatpush1.bf16.msra.mxu0 0
        %822 = vmatprep.subr.bf16.mxu0 0
        %823 = vmatpush1.bf16.msra.mxu0 0
        %824 = vmatprep.subr.bf16.mxu0 0
        %825 = vmatpush1.bf16.msra.mxu0 0
        %826 = vmatprep.subr.bf16.mxu0 0
        %827 = vmatpush1.bf16.msra.mxu0 0
        %828 = vmatprep.subr.bf16.mxu0 0
        %829 = vmatpush1.bf16.msra.mxu0 0
        %830 = vmatprep.subr.bf16.mxu0 0
        %831 = vmatpush1.bf16.msra.mxu0 0
        %832 = vmatprep.mubr.bf16.mxu0 0
        %833 = vmatmul.mubr.bf16.gmra.mrb[0].mxu0 %v795
        %v834 = vpop.f32.mrb[0].mxu0
        %v835 = vadd.f32 0.0, %v834
        %v836 = vpop.f32.mrb[0].mxu0
        %v837 = vpop.f32.mrb[0].mxu0
        %v838 = vpop.f32.mrb[0].mxu0
        %839 = vdwg.mxu0
        %v840 = vpack.c.bf16 %v835, %v835
        %v842 = vsel %vm412, %v840, 0
        %v845 = vsel %vm478, %v405, 0
        %847 = vmatprep.subr.bf16.mxu0 0
        %848 = vmatpush1.bf16.msra.mxu0 %v845
        %849 = vmatprep.subr.bf16.mxu0 0
        %850 = vmatpush1.bf16.msra.mxu0 0
        %851 = vmatprep.subr.bf16.mxu0 0
        %852 = vmatpush1.bf16.msra.mxu0 0
        %853 = vmatprep.subr.bf16.mxu0 0
        %854 = vmatpush1.bf16.msra.mxu0 0
        %855 = vmatprep.subr.bf16.mxu0 0
        %856 = vmatpush1.bf16.msra.mxu0 0
        %857 = vmatprep.subr.bf16.mxu0 0
        %858 = vmatpush1.bf16.msra.mxu0 0
        %859 = vmatprep.subr.bf16.mxu0 0
        %860 = vmatpush1.bf16.msra.mxu0 0
        %861 = vmatprep.subr.bf16.mxu0 0
        %862 = vmatpush1.bf16.msra.mxu0 0
        %863 = vmatprep.subr.bf16.mxu0 0
        %864 = vmatpush1.bf16.msra.mxu0 0
        %865 = vmatprep.subr.bf16.mxu0 0
        %866 = vmatpush1.bf16.msra.mxu0 0
        %867 = vmatprep.subr.bf16.mxu0 0
        %868 = vmatpush1.bf16.msra.mxu0 0
        %869 = vmatprep.subr.bf16.mxu0 0
        %870 = vmatpush1.bf16.msra.mxu0 0
        %871 = vmatprep.subr.bf16.mxu0 0
        %872 = vmatpush1.bf16.msra.mxu0 0
        %873 = vmatprep.subr.bf16.mxu0 0
        %874 = vmatpush1.bf16.msra.mxu0 0
        %875 = vmatprep.subr.bf16.mxu0 0
        %876 = vmatpush1.bf16.msra.mxu0 0
        %877 = vmatprep.subr.bf16.mxu0 0
        %878 = vmatpush1.bf16.msra.mxu0 0
        %879 = vmatprep.mubr.bf16.mxu0 0
        %880 = vmatmul.mubr.bf16.gmra.mrb[0].mxu0 %v842
        %v881 = vpop.f32.mrb[0].mxu0
        %v882 = vadd.f32 0.0, %v881
        %v883 = vpop.f32.mrb[0].mxu0
        %v884 = vpop.f32.mrb[0].mxu0
        %v885 = vpop.f32.mrb[0].mxu0
        %886 = vdwg.mxu0
        %v887 = vadd.f32 %v723, %v882
        %888 = vrot.lane.b32.xlu0 %v408, 104
        %v889 = vpop.permute.xlu0 %888
        %890 = vrot.lane.b32.xlu0 %v408, 72
        %v891 = vpop.permute.xlu0 %890
        %v893 = vsel %vm412, %v889, 0
        %v896 = vsel %vm412, %v891, 0
        %898 = vmatprep.subr.bf16.mxu0 0
        %899 = vmatpush1.bf16.xpose.msra.mxu0 %v896
        %900 = vmatprep.subr.bf16.mxu0 0
        %901 = vmatpush1.bf16.xpose.msra.mxu0 0
        %902 = vmatprep.subr.bf16.mxu0 0
        %903 = vmatpush1.bf16.xpose.msra.mxu0 0
        %904 = vmatprep.subr.bf16.mxu0 0
        %905 = vmatpush1.bf16.xpose.msra.mxu0 0
        %906 = vmatprep.subr.bf16.mxu0 0
        %907 = vmatpush1.bf16.xpose.msra.mxu0 0
        %908 = vmatprep.subr.bf16.mxu0 0
        %909 = vmatpush1.bf16.xpose.msra.mxu0 0
        %910 = vmatprep.subr.bf16.mxu0 0
        %911 = vmatpush1.bf16.xpose.msra.mxu0 0
        %912 = vmatprep.subr.bf16.mxu0 0
        %913 = vmatpush1.bf16.xpose.msra.mxu0 0
        %914 = vmatprep.subr.bf16.mxu0 0
        %915 = vmatpush1.bf16.xpose.msra.mxu0 0
        %916 = vmatprep.subr.bf16.mxu0 0
        %917 = vmatpush1.bf16.xpose.msra.mxu0 0
        %918 = vmatprep.subr.bf16.mxu0 0
        %919 = vmatpush1.bf16.xpose.msra.mxu0 0
        %920 = vmatprep.subr.bf16.mxu0 0
        %921 = vmatpush1.bf16.xpose.msra.mxu0 0
        %922 = vmatprep.subr.bf16.mxu0 0
        %923 = vmatpush1.bf16.xpose.msra.mxu0 0
        %924 = vmatprep.subr.bf16.mxu0 0
        %925 = vmatpush1.bf16.xpose.msra.mxu0 0
        %926 = vmatprep.subr.bf16.mxu0 0
        %927 = vmatpush1.bf16.xpose.msra.mxu0 0
        %928 = vmatprep.subr.bf16.mxu0 0
        %929 = vmatpush1.bf16.xpose.msra.mxu0 0
        %930 = vmatprep.mubr.bf16.mxu0 0
        %931 = vmatmul.mubr.bf16.gmra.mrb[0].mxu0 %v893
        %v932 = vpop.f32.mrb[0].mxu0
        %v933 = vadd.f32 0.0, %v932
        %v934 = vpop.f32.mrb[0].mxu0
        %v935 = vpop.f32.mrb[0].mxu0
        %v936 = vpop.f32.mrb[0].mxu0
        %937 = vdwg.mxu0
        %v938 = vmul.f32 %v933, 0.35355338
        %v939 = vsel %vm407, %v938, -1e+09
        %v940 = vsel %vm412, %v939, -inf
        %941 = vmax.xlane.f32.xlu0 %v940
        %v942 = vpop.xlane.xlu0 %941
        %v943 = vsub.f32 %v939, %v942
        %v944 = vmul.f32 %v943, 1.442695
        %v945 = vpow.pop %v944
        %v946 = vsel %vm412, %v945, 0.0
        %947 = vadd.xlane.f32.xlu0 %v946
        %v948 = vpop.xlane.xlu0 %947
        %v949 = vrcp.pop %v948
        %v950 = vmul.f32 %v945, %v949
        %v951 = vpack.c.bf16 %v950, %v950
        %952 = vrot.lane.b32.xlu0 %v408, 40
        %v953 = vpop.permute.xlu0 %952
        %v955 = vsel %vm412, %v951, 0
        %v958 = vsel %vm478, %v953, 0
        %960 = vmatprep.subr.bf16.mxu0 0
        %961 = vmatpush1.bf16.msra.mxu0 %v958
        %962 = vmatprep.subr.bf16.mxu0 0
        %963 = vmatpush1.bf16.msra.mxu0 0
        %964 = vmatprep.subr.bf16.mxu0 0
        %965 = vmatpush1.bf16.msra.mxu0 0
        %966 = vmatprep.subr.bf16.mxu0 0
        %967 = vmatpush1.bf16.msra.mxu0 0
        %968 = vmatprep.subr.bf16.mxu0 0
        %969 = vmatpush1.bf16.msra.mxu0 0
        %970 = vmatprep.subr.bf16.mxu0 0
        %971 = vmatpush1.bf16.msra.mxu0 0
        %972 = vmatprep.subr.bf16.mxu0 0
        %973 = vmatpush1.bf16.msra.mxu0 0
        %974 = vmatprep.subr.bf16.mxu0 0
        %975 = vmatpush1.bf16.msra.mxu0 0
        %976 = vmatprep.subr.bf16.mxu0 0
        %977 = vmatpush1.bf16.msra.mxu0 0
        %978 = vmatprep.subr.bf16.mxu0 0
        %979 = vmatpush1.bf16.msra.mxu0 0
        %980 = vmatprep.subr.bf16.mxu0 0
        %981 = vmatpush1.bf16.msra.mxu0 0
        %982 = vmatprep.subr.bf16.mxu0 0
        %983 = vmatpush1.bf16.msra.mxu0 0
        %984 = vmatprep.subr.bf16.mxu0 0
        %985 = vmatpush1.bf16.msra.mxu0 0
        %986 = vmatprep.subr.bf16.mxu0 0
        %987 = vmatpush1.bf16.msra.mxu0 0
        %988 = vmatprep.subr.bf16.mxu0 0
        %989 = vmatpush1.bf16.msra.mxu0 0
        %990 = vmatprep.subr.bf16.mxu0 0
        %991 = vmatpush1.bf16.msra.mxu0 0
        %992 = vmatprep.mubr.bf16.mxu0 0
        %993 = vmatmul.mubr.bf16.gmra.mrb[0].mxu0 %v955
        %v994 = vpop.f32.mrb[0].mxu0
        %v995 = vadd.f32 0.0, %v994
        %v996 = vpop.f32.mrb[0].mxu0
        %v997 = vpop.f32.mrb[0].mxu0
        %v998 = vpop.f32.mrb[0].mxu0
        %999 = vdwg.mxu0
        %v1000 = vpack.c.bf16 %v995, %v995
        %v1002 = vsel %vm412, %v1000, 0
        %v1005 = vsel %vm478, %v406, 0
        %1007 = vmatprep.subr.bf16.mxu0 0
        %1008 = vmatpush1.bf16.msra.mxu0 %v1005
        %1009 = vmatprep.subr.bf16.mxu0 0
        %1010 = vmatpush1.bf16.msra.mxu0 0
        %1011 = vmatprep.subr.bf16.mxu0 0
        %1012 = vmatpush1.bf16.msra.mxu0 0
        %1013 = vmatprep.subr.bf16.mxu0 0
        %1014 = vmatpush1.bf16.msra.mxu0 0
        %1015 = vmatprep.subr.bf16.mxu0 0
        %1016 = vmatpush1.bf16.msra.mxu0 0
        %1017 = vmatprep.subr.bf16.mxu0 0
        %1018 = vmatpush1.bf16.msra.mxu0 0
        %1019 = vmatprep.subr.bf16.mxu0 0
        %1020 = vmatpush1.bf16.msra.mxu0 0
        %1021 = vmatprep.subr.bf16.mxu0 0
        %1022 = vmatpush1.bf16.msra.mxu0 0
        %1023 = vmatprep.subr.bf16.mxu0 0
        %1024 = vmatpush1.bf16.msra.mxu0 0
        %1025 = vmatprep.subr.bf16.mxu0 0
        %1026 = vmatpush1.bf16.msra.mxu0 0
        %1027 = vmatprep.subr.bf16.mxu0 0
        %1028 = vmatpush1.bf16.msra.mxu0 0
        %1029 = vmatprep.subr.bf16.mxu0 0
        %1030 = vmatpush1.bf16.msra.mxu0 0
        %1031 = vmatprep.subr.bf16.mxu0 0
        %1032 = vmatpush1.bf16.msra.mxu0 0
        %1033 = vmatprep.subr.bf16.mxu0 0
        %1034 = vmatpush1.bf16.msra.mxu0 0
        %1035 = vmatprep.subr.bf16.mxu0 0
        %1036 = vmatpush1.bf16.msra.mxu0 0
        %1037 = vmatprep.subr.bf16.mxu0 0
        %1038 = vmatpush1.bf16.msra.mxu0 0
        %1039 = vmatprep.mubr.bf16.mxu0 0
        %1040 = vmatmul.mubr.bf16.gmra.mrb[0].mxu0 %v1002
        %v1041 = vpop.f32.mrb[0].mxu0
        %v1042 = vadd.f32 0.0, %v1041
        %v1043 = vpop.f32.mrb[0].mxu0
        %v1044 = vpop.f32.mrb[0].mxu0
        %v1045 = vpop.f32.mrb[0].mxu0
        %1046 = vdwg.mxu0
        %v1047 = vadd.f32 %v887, %v1042
        %v1048 = vadd.f32 %v310, %v1047
        %v1049 = vld [vmem:[%s5] sm:$0x1]
        %v1051 = vlaneseq
        %v1052 = vshrl.u32 %v1051, 7
        %v1053 = vsub.s32 0, %v1052
        %v1054 = vrot.slane %v1049, %v1053
        %v1056 = vadd.f32 %v1048, %v1054
        %1057 = vst.msk [vmem:[%s308] sm:$0xff] %vm311, %v1056
        %s1058 = sand.u32 %s164, 1
        %s1059 = scalar_lea.sflag [#allocation4], %s1058
        %s1060 = sand.u32 %s164, 1
        %s1061 = smul.addr %s1060, 8
        %s1062 = scalar_lea.vmem [#allocation10], %s1061
        // Predicated region
        $region61: #{tpu_custom_call.1} parent=43 // pred_check
          %p1063 = pneg %p174
        $region62: #{tpu_custom_call.1} parent=43 // pred_check_branch
          %1065 = sbr.rel (%p1063) target = $region64
        $region63: #{tpu_custom_call.1} parent=43 // pred_region
          %s1067 = ssub.s32 128, 128
          %1068 = vsyncadd %s1059, %s1067
          %s1069 = smul.addr %s25, 128
          %s1070 = scalar_lea.hbm %s6, %s1069
          %s1072 = sshll.u32 %s1062, 4
          %s1073 = int_to_ptr.vmem [resolvable:$true] %s1072
          %1075 = dma.vmem_to_hbm [thread:$0]  %s1073, 128, %s1070, %s1059
        $region64: #{tpu_custom_call.1} parent=43 // pred_fallthru
          _
      $region44: #{tpu_custom_call.1} parent=5 // pred_fallthru
        _
      %p1076 = scmp.le.s32.totalorder 2, %s20
      // Predicated region
      $region65: #{tpu_custom_call.1} parent=5 // pred_check
        %p1077 = pneg %p1076
      $region66: #{tpu_custom_call.1} parent=5 // pred_check_branch
        %1079 = sbr.rel (%p1077) target = $region68
      $region67: #{tpu_custom_call.1} parent=5 // pred_region
        %s1080 = ssub.s32 %s20, 2
        // Predicated region
        $region69: #{tpu_custom_call.1} parent=67 // pred_check
          %p1081 = pneg %p180
        $region70: #{tpu_custom_call.1} parent=67 // pred_check_branch
          %1083 = sbr.rel (%p1081) target = $region72
        $region71: #{tpu_custom_call.1} parent=67 // pred_region
          %s1084 = sand.u32 %s165, 1
          %s1085 = scalar_lea.sflag [#allocation4], %s1084
          %s1086 = sand.u32 %s165, 1
          %s1087 = smul.addr %s1086, 8
          %s1088 = scalar_lea.vmem [#allocation10], %s1087
          %1089 = dma.done %s1085, 128
        $region72: #{tpu_custom_call.1} parent=67 // pred_fallthru
          _
      $region68: #{tpu_custom_call.1} parent=5 // pred_fallthru
        _
    $region6: #{tpu_custom_call.1} parent=1 // loop_footer
      %s24 = sadd.s32 1, %s20
    $region7: #{tpu_custom_call.1} parent=1 // loop_footer_branch
      %19 = sbr.rel target = $region3
    $region8: #{tpu_custom_call.1} parent=1 // loop_exit
      _
    %1090 = vsyncpa [#allocation3], 1
    %s1091 = scalar_lea.sflag [#allocation3], 1
    %1092 = vsyncpa %s1091, 1
    %1093 = vsyncpa [#allocation6], 1
    %1094 = vsyncpa [#allocation9], 1
    %1095 = vsyncpa [#allocation4], 1
    %s1096 = scalar_lea.sflag [#allocation4], 1
    %1097 = vsyncpa %s1096, 1

</llo_original>
